<compile_context>
chip_gen: v7x
topology: tpu7x:2x2x1
jax: 0.10.0
libtpu: 0.0.40
codegen_flags: <defaults>
</compile_context>

<pallas_src>
import functools
import math

import jax
import jax.numpy as jnp
from jax.experimental import pallas as pl
from jax.experimental.pallas import tpu as pltpu

RMS_EPS = 1.1920929e-07  # torch.finfo(float32).eps (nn.RMSNorm default eps=None)


def _rmsnorm(x, w, eps):
    var = jnp.mean(x * x, axis=-1, keepdims=True)
    return x * jax.lax.rsqrt(var + eps) * w


def decoder_block_kernel(x_ref, n1_ref, n2_ref,
                         wqT_ref, wkT_ref, wvT_ref, woT_ref,
                         cos_ref, sin_ref,
                         wgT_ref, wuT_ref, wdT_ref,
                         o_ref, x2n_ref, *, num_heads, eps):
    h_chunk = pl.program_id(1)

    # ------- attention + residual: once per batch element (h_chunk == 0) ----
    @pl.when(h_chunk == 0)
    def _attention():
        x = x_ref[0]                          # (S, D) f32
        S, D = x.shape
        hd = D // num_heads
        half = hd // 2
        scale = 1.0 / math.sqrt(hd)

        n1 = n1_ref[...]                      # (1, D) f32
        n2 = n2_ref[...]                      # (1, D) f32
        cos = cos_ref[...]                    # (S, hd) f32
        sin = sin_ref[...]                    # (S, hd) f32

        xn = _rmsnorm(x, n1, eps)             # f32
        xn_b = xn.astype(jnp.bfloat16)

        # bias-free q/k/v projections (weights already transposed, bf16)
        q = jnp.dot(xn_b, wqT_ref[...], preferred_element_type=jnp.float32)
        k = jnp.dot(xn_b, wkT_ref[...], preferred_element_type=jnp.float32)
        v = jnp.dot(xn_b, wvT_ref[...], preferred_element_type=jnp.float32)

        # causal additive mask generated in-kernel (no (S,S) HBM operand)
        row = jax.lax.broadcasted_iota(jnp.int32, (S, S), 0)
        col = jax.lax.broadcasted_iota(jnp.int32, (S, S), 1)
        mask = jnp.where(col <= row, 0.0, -1e9).astype(jnp.float32)

        def rope(t):                          # t: (S, hd) f32
            t1 = t[:, :half]
            t2 = t[:, half:]
            rotated = jnp.concatenate([-t2, t1], axis=-1)
            return t * cos + rotated * sin

        # per-head attention (small static head count); outputs concatenated
        # and pushed through ONE full-width output projection.
        heads = []
        for h in range(num_heads):
            sl = slice(h * hd, (h + 1) * hd)
            qh = rope(q[:, sl]).astype(jnp.bfloat16)
            kh = rope(k[:, sl]).astype(jnp.bfloat16)
            vh = v[:, sl].astype(jnp.bfloat16)
            # q @ k^T without materializing a transpose
            s = jax.lax.dot_general(
                qh, kh, (((1,), (1,)), ((), ())),
                preferred_element_type=jnp.float32) * scale
            s = s + mask
            s = s - jnp.max(s, axis=-1, keepdims=True)
            p = jnp.exp(s)
            p = p * pl.reciprocal(jnp.sum(p, axis=-1, keepdims=True),
                                  approx=True)
            heads.append(jnp.dot(p.astype(jnp.bfloat16), vh,
                                 preferred_element_type=jnp.float32))
        attn = jnp.concatenate(heads, axis=-1)            # (S, D) f32
        attn_out = jnp.dot(attn.astype(jnp.bfloat16), woT_ref[...],
                           preferred_element_type=jnp.float32)

        # residual onto the *normalized* x (exactly as in the PyTorch block)
        x1 = xn + attn_out
        o_ref[0] = x1                          # accumulator: x1 + sum_h ffn_h
        x2n_ref[...] = _rmsnorm(x1, n2, eps)   # kept for the MLP chunks

    # ------- SwiGLU MLP, one hidden-dim chunk per grid step ------------------
    x2n_b = x2n_ref[...].astype(jnp.bfloat16)
    g = jnp.dot(x2n_b, wgT_ref[...], preferred_element_type=jnp.float32)
    u = jnp.dot(x2n_b, wuT_ref[...], preferred_element_type=jnp.float32)
    hact = (g * jax.nn.sigmoid(g)) * u                     # SiLU(gate) * up, f32
    o_ref[0] += jnp.dot(hact.astype(jnp.bfloat16), wdT_ref[...],
                        preferred_element_type=jnp.float32)


def decoder_block(x, params, cos, sin, num_heads, *, th=128, eps=RMS_EPS):
    B, S, D = x.shape
    H = params["w_gate"].shape[0]
    hd = D // num_heads
    th = min(th, H)
    assert H % th == 0, "hidden dim must be divisible by the hidden tile"
    n_hc = H // th

    bf = jnp.bfloat16
    # Pre-transpose (PyTorch (out,in) -> (in,out)) and cast to bf16 outside
    # the kernel so the MXU gets contraction-ready operands.
    wqT = params["wq"].T.astype(bf)
    wkT = params["wk"].T.astype(bf)
    wvT = params["wv"].T.astype(bf)
    woT = params["wo"].T.astype(bf)
    wgT = params["w_gate"].T.astype(bf)     # (D, H)
    wuT = params["w_up"].T.astype(bf)       # (D, H)
    wdT = params["w_down"].T.astype(bf)     # (H, D)

    def const(shape):
        n = len(shape)
        return pl.BlockSpec(shape, lambda b, h: (0,) * n)

    kernel = functools.partial(decoder_block_kernel,
                               num_heads=num_heads, eps=eps)
    return pl.pallas_call(
        kernel,
        out_shape=jax.ShapeDtypeStruct((B, S, D), jnp.float32),
        grid_spec=pltpu.PrefetchScalarGridSpec(
            num_scalar_prefetch=0,
            grid=(B, n_hc),                               # reduction axis last
            in_specs=[
                pl.BlockSpec((1, S, D), lambda b, h: (b, 0, 0)),   # x
                const((1, D)), const((1, D)),                      # norm1, norm2
                const((D, D)), const((D, D)),                      # wqT, wkT
                const((D, D)), const((D, D)),                      # wvT, woT
                const((S, hd)), const((S, hd)),                    # cos, sin
                pl.BlockSpec((D, th), lambda b, h: (0, h)),        # gateT chunk
                pl.BlockSpec((D, th), lambda b, h: (0, h)),        # upT chunk
                pl.BlockSpec((th, D), lambda b, h: (h, 0)),        # downT chunk
            ],
            out_specs=pl.BlockSpec((1, S, D), lambda b, h: (b, 0, 0)),
            scratch_shapes=[pltpu.VMEM((S, D), jnp.float32)],      # norm2(x1)
        ),
        compiler_params=pltpu.CompilerParams(
            dimension_semantics=("parallel", "arbitrary"),
            vmem_limit_bytes=32 * 1024 * 1024),
    )(x, params["norm1"], params["norm2"],
      wqT, wkT, wvT, woT, cos, sin, wgT, wuT, wdT)


def llama_decoder(x, layer_params, cos, sin, num_heads):
    total_aux_loss = 0.0  # use_moe=False: aux_loss is None for every layer
    for p in layer_params:
        x = decoder_block(x, p, cos, sin, num_heads)
    return x, total_aux_loss


# ---------------- plain-JAX glue: parameters, RoPE tables, reference --------

def rope_tables(seq_len, head_dim, base=10000.0):
    inv = 1.0 / (base ** (jnp.arange(0, head_dim, 2, dtype=jnp.float32) / head_dim))
    t = jnp.arange(seq_len, dtype=jnp.float32)
    freqs = jnp.outer(t, inv)                              # (S, hd/2)
    emb = jnp.concatenate([freqs, freqs], axis=-1)         # (S, hd)
    return jnp.cos(emb), jnp.sin(emb)


def init_layer_params(key, d_model, hidden):
    ks = jax.random.split(key, 7)
    s = 0.02
    return {
        "norm1": jnp.ones((1, d_model), jnp.float32),
        "norm2": jnp.ones((1, d_model), jnp.float32),
        "wq": s * jax.random.normal(ks[0], (d_model, d_model), jnp.float32),
        "wk": s * jax.random.normal(ks[1], (d_model, d_model), jnp.float32),
        "wv": s * jax.random.normal(ks[2], (d_model, d_model), jnp.float32),
        "wo": s * jax.random.normal(ks[3], (d_model, d_model), jnp.float32),
        "w_gate": s * jax.random.normal(ks[4], (hidden, d_model), jnp.float32),
        "w_up": s * jax.random.normal(ks[5], (hidden, d_model), jnp.float32),
        "w_down": s * jax.random.normal(ks[6], (d_model, hidden), jnp.float32),
    }


def reference_block(x, p, cos, sin, num_heads, eps=RMS_EPS):
    def rms(v, w):
        return v * jax.lax.rsqrt(jnp.mean(v * v, -1, keepdims=True) + eps) * w

    B, S, D = x.shape
    hd = D // num_heads
    half = hd // 2
    xn = rms(x, p["norm1"])
    q = xn @ p["wq"].T
    k = xn @ p["wk"].T
    v = xn @ p["wv"].T
    qh = q.reshape(B, S, num_heads, hd).transpose(0, 2, 1, 3)
    kh = k.reshape(B, S, num_heads, hd).transpose(0, 2, 1, 3)
    vh = v.reshape(B, S, num_heads, hd).transpose(0, 2, 1, 3)

    def rope(t):
        rot = jnp.concatenate([-t[..., half:], t[..., :half]], axis=-1)
        return t * cos + rot * sin

    qh = rope(qh)
    kh = rope(kh)
    mask = jnp.where(jnp.tril(jnp.ones((S, S), dtype=bool)), 0.0, -1e9)
    sc = jnp.einsum("bhqd,bhkd->bhqk", qh, kh) / math.sqrt(hd) + mask
    pw = jax.nn.softmax(sc, axis=-1)
    o = jnp.einsum("bhqk,bhkd->bhqd", pw, vh).transpose(0, 2, 1, 3).reshape(B, S, D)
    x1 = xn + o @ p["wo"].T
    x2n = rms(x1, p["norm2"])
    ffn = (jax.nn.silu(x2n @ p["w_gate"].T) * (x2n @ p["w_up"].T)) @ p["w_down"].T
    return x1 + ffn


def reference_decoder(x, layer_params, cos, sin, num_heads):
    for p in layer_params:
        x = reference_block(x, p, cos, sin, num_heads)
    return x, 0.0


if __name__ == "__main__":
    B, S, D, NUM_HEADS, NUM_LAYERS = 2, 8, 64, 4, 2
    HIDDEN = 4 * D  # LlamaMLP(d_model, 4*d_model) -> 256 (2 hidden chunks of 128)

    key = jax.random.PRNGKey(0)
    kx, *lkeys = jax.random.split(key, NUM_LAYERS + 1)
    x = jax.random.normal(kx, (B, S, D), jnp.float32)
    layer_params = [init_layer_params(k, D, HIDDEN) for k in lkeys]

    cos, sin = rope_tables(S, D // NUM_HEADS)

    out, total_aux_loss = llama_decoder(x, layer_params, cos, sin, NUM_HEADS)
    out = jax.block_until_ready(out)

    ref, _ = reference_decoder(x, layer_params, cos, sin, NUM_HEADS)
    # bf16 matmul operands + approx softmax reciprocal -> loosened tolerance
    assert jnp.allclose(out, ref, rtol=2e-2, atol=2e-2), "mismatch vs JAX reference"
    assert total_aux_loss == 0.0  # use_moe=False path

    print("KERNEL_OK")
</pallas_src>

<mosaic_0001>
module attributes {stable_mosaic.version = 11 : i64} {
  func.func @decoder_block_kernel(%arg0: i32, %arg1: i32, %arg2: memref<1x8x64xf32, #tpu.memory_space<vmem>>, %arg3: memref<1x64xf32, #tpu.memory_space<vmem>>, %arg4: memref<1x64xf32, #tpu.memory_space<vmem>>, %arg5: memref<64x64xbf16, #tpu.memory_space<vmem>>, %arg6: memref<64x64xbf16, #tpu.memory_space<vmem>>, %arg7: memref<64x64xbf16, #tpu.memory_space<vmem>>, %arg8: memref<64x64xbf16, #tpu.memory_space<vmem>>, %arg9: memref<8x16xf32, #tpu.memory_space<vmem>>, %arg10: memref<8x16xf32, #tpu.memory_space<vmem>>, %arg11: memref<64x128xbf16, #tpu.memory_space<vmem>>, %arg12: memref<64x128xbf16, #tpu.memory_space<vmem>>, %arg13: memref<128x64xbf16, #tpu.memory_space<vmem>>, %arg14: memref<1x8x64xf32, #tpu.memory_space<vmem>>, %arg15: memref<8x64xf32, #tpu.memory_space<vmem>>) attributes {dimension_semantics = [#tpu.dimension_semantics<parallel>, #tpu.dimension_semantics<arbitrary>], iteration_bounds = array<i64: 2, 2>, scalar_prefetch = 0 : i64, scratch_operands = 1 : i64, tpu.core_type = #tpu.core_type<tc>, window_params = [{transform_indices = @transform_0, window_bounds = array<i64: 1, 8, 64>}, {pipeline_mode = #tpu.pipeline_mode<synchronous>, transform_indices = @transform_1, window_bounds = array<i64: 1, 64>}, {pipeline_mode = #tpu.pipeline_mode<synchronous>, transform_indices = @transform_2, window_bounds = array<i64: 1, 64>}, {pipeline_mode = #tpu.pipeline_mode<synchronous>, transform_indices = @transform_3, window_bounds = array<i64: 64, 64>}, {pipeline_mode = #tpu.pipeline_mode<synchronous>, transform_indices = @transform_4, window_bounds = array<i64: 64, 64>}, {pipeline_mode = #tpu.pipeline_mode<synchronous>, transform_indices = @transform_5, window_bounds = array<i64: 64, 64>}, {pipeline_mode = #tpu.pipeline_mode<synchronous>, transform_indices = @transform_6, window_bounds = array<i64: 64, 64>}, {pipeline_mode = #tpu.pipeline_mode<synchronous>, transform_indices = @transform_7, window_bounds = array<i64: 8, 16>}, {pipeline_mode = #tpu.pipeline_mode<synchronous>, transform_indices = @transform_8, window_bounds = array<i64: 8, 16>}, {transform_indices = @transform_9, window_bounds = array<i64: 64, 128>}, {transform_indices = @transform_10, window_bounds = array<i64: 64, 128>}, {transform_indices = @transform_11, window_bounds = array<i64: 128, 64>}, {transform_indices = @transform_12, window_bounds = array<i64: 1, 8, 64>}]} {
    %c0_i32 = arith.constant 0 : i32
    %0 = arith.cmpi eq, %arg1, %c0_i32 : i32
    %1 = arith.extui %0 : i1 to i32
    %c0_i32_0 = arith.constant 0 : i32
    %2 = arith.cmpi ne, %1, %c0_i32_0 : i32
    scf.if %2 {
      %c0_17 = arith.constant 0 : index
      %c0_18 = arith.constant 0 : index
      %c0_19 = arith.constant 0 : index
      %25 = vector.load %arg2[%c0_17, %c0_18, %c0_19] : memref<1x8x64xf32, #tpu.memory_space<vmem>>, vector<1x8x64xf32>
      %26 = vector.shape_cast %25 : vector<1x8x64xf32> to vector<8x64xf32>
      %c0_20 = arith.constant 0 : index
      %c0_21 = arith.constant 0 : index
      %27 = vector.load %arg3[%c0_20, %c0_21] : memref<1x64xf32, #tpu.memory_space<vmem>>, vector<1x64xf32>
      %c0_22 = arith.constant 0 : index
      %c0_23 = arith.constant 0 : index
      %28 = vector.load %arg4[%c0_22, %c0_23] : memref<1x64xf32, #tpu.memory_space<vmem>>, vector<1x64xf32>
      %c0_24 = arith.constant 0 : index
      %c0_25 = arith.constant 0 : index
      %29 = vector.load %arg9[%c0_24, %c0_25] : memref<8x16xf32, #tpu.memory_space<vmem>>, vector<8x16xf32>
      %c0_26 = arith.constant 0 : index
      %c0_27 = arith.constant 0 : index
      %30 = vector.load %arg10[%c0_26, %c0_27] : memref<8x16xf32, #tpu.memory_space<vmem>>, vector<8x16xf32>
      %31 = arith.mulf %26, %26 : vector<8x64xf32>
      %cst_28 = arith.constant dense<0.000000e+00> : vector<8xf32>
      %32 = vector.multi_reduction <add>, %31, %cst_28 [1] : vector<8x64xf32> to vector<8xf32>
      %33 = vector.shape_cast %32 : vector<8xf32> to vector<8x1xf32>
      %cst_29 = arith.constant 6.400000e+01 : f32
      %34 = vector.broadcast %cst_29 : f32 to vector<8x1xf32>
      %35 = arith.divf %33, %34 : vector<8x1xf32>
      %cst_30 = arith.constant 1.1920929E-7 : f32
      %36 = vector.broadcast %cst_30 : f32 to vector<8x1xf32>
      %37 = arith.addf %35, %36 : vector<8x1xf32>
      %38 = math.rsqrt %37 : vector<8x1xf32>
      %39 = vector.broadcast %38 : vector<8x1xf32> to vector<8x64xf32>
      %40 = arith.mulf %26, %39 : vector<8x64xf32>
      %41 = vector.broadcast %27 : vector<1x64xf32> to vector<8x64xf32>
      %42 = arith.mulf %40, %41 : vector<8x64xf32>
      %43 = arith.truncf %42 : vector<8x64xf32> to vector<8x64xbf16>
      %c0_31 = arith.constant 0 : index
      %c0_32 = arith.constant 0 : index
      %44 = vector.load %arg5[%c0_31, %c0_32] : memref<64x64xbf16, #tpu.memory_space<vmem>>, vector<64x64xbf16>
      %cst_33 = arith.constant dense<0.000000e+00> : vector<8x64xf32>
      %45 = tpu.matmul %43, %44, %cst_33 {dimension_numbers = #tpu.dot_dimension_numbers<[1], [0], [0], [1], [0, 0, 1, 1], [], []>} : vector<8x64xbf16>, vector<64x64xbf16>, vector<8x64xf32> -> vector<8x64xf32>
      %c0_34 = arith.constant 0 : index
      %c0_35 = arith.constant 0 : index
      %46 = vector.load %arg6[%c0_34, %c0_35] : memref<64x64xbf16, #tpu.memory_space<vmem>>, vector<64x64xbf16>
      %cst_36 = arith.constant dense<0.000000e+00> : vector<8x64xf32>
      %47 = tpu.matmul %43, %46, %cst_36 {dimension_numbers = #tpu.dot_dimension_numbers<[1], [0], [0], [1], [0, 0, 1, 1], [], []>} : vector<8x64xbf16>, vector<64x64xbf16>, vector<8x64xf32> -> vector<8x64xf32>
      %c0_37 = arith.constant 0 : index
      %c0_38 = arith.constant 0 : index
      %48 = vector.load %arg7[%c0_37, %c0_38] : memref<64x64xbf16, #tpu.memory_space<vmem>>, vector<64x64xbf16>
      %cst_39 = arith.constant dense<0.000000e+00> : vector<8x64xf32>
      %49 = tpu.matmul %43, %48, %cst_39 {dimension_numbers = #tpu.dot_dimension_numbers<[1], [0], [0], [1], [0, 0, 1, 1], [], []>} : vector<8x64xbf16>, vector<64x64xbf16>, vector<8x64xf32> -> vector<8x64xf32>
      %50 = tpu.iota {dimensions = array<i32: 0>} : vector<8x8xi32>
      %51 = tpu.iota {dimensions = array<i32: 1>} : vector<8x8xi32>
      %52 = arith.cmpi sle, %51, %50 : vector<8x8xi32>
      %cst_40 = arith.constant 0.000000e+00 : f32
      %cst_41 = arith.constant -1.000000e+09 : f32
      %53 = vector.broadcast %cst_40 : f32 to vector<8x8xf32>
      %54 = vector.broadcast %cst_41 : f32 to vector<8x8xf32>
      %55 = arith.select %52, %53, %54 : vector<8x8xi1>, vector<8x8xf32>
      %56 = vector.extract_strided_slice %45 {offsets = [0, 0], sizes = [8, 16], strides = [1, 1]} : vector<8x64xf32> to vector<8x16xf32>
      %57 = vector.extract_strided_slice %56 {offsets = [0, 0], sizes = [8, 8], strides = [1, 1]} : vector<8x16xf32> to vector<8x8xf32>
      %58 = vector.extract_strided_slice %56 {offsets = [0, 8], sizes = [8, 8], strides = [1, 1]} : vector<8x16xf32> to vector<8x8xf32>
      %cst_42 = arith.constant 0.000000e+00 : f32
      %59 = vector.broadcast %cst_42 : f32 to vector<8x8xf32>
      %60 = arith.subf %59, %58 : vector<8x8xf32>
      %61 = tpu.concatenate %60, %57 in 1 : vector<8x8xf32>, vector<8x8xf32> -> vector<8x16xf32>
      %62 = arith.mulf %56, %29 : vector<8x16xf32>
      %63 = arith.mulf %61, %30 : vector<8x16xf32>
      %64 = arith.addf %62, %63 : vector<8x16xf32>
      %65 = arith.truncf %64 : vector<8x16xf32> to vector<8x16xbf16>
      %66 = vector.extract_strided_slice %47 {offsets = [0, 0], sizes = [8, 16], strides = [1, 1]} : vector<8x64xf32> to vector<8x16xf32>
      %67 = vector.extract_strided_slice %66 {offsets = [0, 0], sizes = [8, 8], strides = [1, 1]} : vector<8x16xf32> to vector<8x8xf32>
      %68 = vector.extract_strided_slice %66 {offsets = [0, 8], sizes = [8, 8], strides = [1, 1]} : vector<8x16xf32> to vector<8x8xf32>
      %cst_43 = arith.constant 0.000000e+00 : f32
      %69 = vector.broadcast %cst_43 : f32 to vector<8x8xf32>
      %70 = arith.subf %69, %68 : vector<8x8xf32>
      %71 = tpu.concatenate %70, %67 in 1 : vector<8x8xf32>, vector<8x8xf32> -> vector<8x16xf32>
      %72 = arith.mulf %66, %29 : vector<8x16xf32>
      %73 = arith.mulf %71, %30 : vector<8x16xf32>
      %74 = arith.addf %72, %73 : vector<8x16xf32>
      %75 = arith.truncf %74 : vector<8x16xf32> to vector<8x16xbf16>
      %76 = vector.extract_strided_slice %49 {offsets = [0, 0], sizes = [8, 16], strides = [1, 1]} : vector<8x64xf32> to vector<8x16xf32>
      %77 = arith.truncf %76 : vector<8x16xf32> to vector<8x16xbf16>
      %cst_44 = arith.constant dense<0.000000e+00> : vector<8x8xf32>
      %78 = tpu.matmul %65, %75, %cst_44 {dimension_numbers = #tpu.dot_dimension_numbers<[1], [1], [0], [0], [0, 0, 1, 0], [], []>} : vector<8x16xbf16>, vector<8x16xbf16>, vector<8x8xf32> -> vector<8x8xf32>
      %cst_45 = arith.constant 2.500000e-01 : f32
      %79 = vector.broadcast %cst_45 : f32 to vector<8x8xf32>
      %80 = arith.mulf %78, %79 : vector<8x8xf32>
      %81 = arith.addf %80, %55 : vector<8x8xf32>
      %cst_46 = arith.constant dense<0xFF800000> : vector<8xf32>
      %82 = vector.multi_reduction <maximumf>, %81, %cst_46 [1] : vector<8x8xf32> to vector<8xf32>
      %83 = vector.shape_cast %82 : vector<8xf32> to vector<8x1xf32>
      %84 = vector.broadcast %83 : vector<8x1xf32> to vector<8x8xf32>
      %85 = arith.subf %81, %84 : vector<8x8xf32>
      %86 = math.exp %85 : vector<8x8xf32>
      %cst_47 = arith.constant dense<0.000000e+00> : vector<8xf32>
      %87 = vector.multi_reduction <add>, %86, %cst_47 [1] : vector<8x8xf32> to vector<8xf32>
      %88 = vector.shape_cast %87 : vector<8xf32> to vector<8x1xf32>
      %89 = tpu.reciprocal %88 {approx = true} : vector<8x1xf32> -> vector<8x1xf32>
      %90 = vector.broadcast %89 : vector<8x1xf32> to vector<8x8xf32>
      %91 = arith.mulf %86, %90 : vector<8x8xf32>
      %92 = arith.truncf %91 : vector<8x8xf32> to vector<8x8xbf16>
      %cst_48 = arith.constant dense<0.000000e+00> : vector<8x16xf32>
      %93 = tpu.matmul %92, %77, %cst_48 {dimension_numbers = #tpu.dot_dimension_numbers<[1], [0], [0], [1], [0, 0, 1, 1], [], []>} : vector<8x8xbf16>, vector<8x16xbf16>, vector<8x16xf32> -> vector<8x16xf32>
      %94 = vector.extract_strided_slice %45 {offsets = [0, 16], sizes = [8, 16], strides = [1, 1]} : vector<8x64xf32> to vector<8x16xf32>
      %95 = vector.extract_strided_slice %94 {offsets = [0, 0], sizes = [8, 8], strides = [1, 1]} : vector<8x16xf32> to vector<8x8xf32>
      %96 = vector.extract_strided_slice %94 {offsets = [0, 8], sizes = [8, 8], strides = [1, 1]} : vector<8x16xf32> to vector<8x8xf32>
      %cst_49 = arith.constant 0.000000e+00 : f32
      %97 = vector.broadcast %cst_49 : f32 to vector<8x8xf32>
      %98 = arith.subf %97, %96 : vector<8x8xf32>
      %99 = tpu.concatenate %98, %95 in 1 : vector<8x8xf32>, vector<8x8xf32> -> vector<8x16xf32>
      %100 = arith.mulf %94, %29 : vector<8x16xf32>
      %101 = arith.mulf %99, %30 : vector<8x16xf32>
      %102 = arith.addf %100, %101 : vector<8x16xf32>
      %103 = arith.truncf %102 : vector<8x16xf32> to vector<8x16xbf16>
      %104 = vector.extract_strided_slice %47 {offsets = [0, 16], sizes = [8, 16], strides = [1, 1]} : vector<8x64xf32> to vector<8x16xf32>
      %105 = vector.extract_strided_slice %104 {offsets = [0, 0], sizes = [8, 8], strides = [1, 1]} : vector<8x16xf32> to vector<8x8xf32>
      %106 = vector.extract_strided_slice %104 {offsets = [0, 8], sizes = [8, 8], strides = [1, 1]} : vector<8x16xf32> to vector<8x8xf32>
      %cst_50 = arith.constant 0.000000e+00 : f32
      %107 = vector.broadcast %cst_50 : f32 to vector<8x8xf32>
      %108 = arith.subf %107, %106 : vector<8x8xf32>
      %109 = tpu.concatenate %108, %105 in 1 : vector<8x8xf32>, vector<8x8xf32> -> vector<8x16xf32>
      %110 = arith.mulf %104, %29 : vector<8x16xf32>
      %111 = arith.mulf %109, %30 : vector<8x16xf32>
      %112 = arith.addf %110, %111 : vector<8x16xf32>
      %113 = arith.truncf %112 : vector<8x16xf32> to vector<8x16xbf16>
      %114 = vector.extract_strided_slice %49 {offsets = [0, 16], sizes = [8, 16], strides = [1, 1]} : vector<8x64xf32> to vector<8x16xf32>
      %115 = arith.truncf %114 : vector<8x16xf32> to vector<8x16xbf16>
      %cst_51 = arith.constant dense<0.000000e+00> : vector<8x8xf32>
      %116 = tpu.matmul %103, %113, %cst_51 {dimension_numbers = #tpu.dot_dimension_numbers<[1], [1], [0], [0], [0, 0, 1, 0], [], []>} : vector<8x16xbf16>, vector<8x16xbf16>, vector<8x8xf32> -> vector<8x8xf32>
      %cst_52 = arith.constant 2.500000e-01 : f32
      %117 = vector.broadcast %cst_52 : f32 to vector<8x8xf32>
      %118 = arith.mulf %116, %117 : vector<8x8xf32>
      %119 = arith.addf %118, %55 : vector<8x8xf32>
      %cst_53 = arith.constant dense<0xFF800000> : vector<8xf32>
      %120 = vector.multi_reduction <maximumf>, %119, %cst_53 [1] : vector<8x8xf32> to vector<8xf32>
      %121 = vector.shape_cast %120 : vector<8xf32> to vector<8x1xf32>
      %122 = vector.broadcast %121 : vector<8x1xf32> to vector<8x8xf32>
      %123 = arith.subf %119, %122 : vector<8x8xf32>
      %124 = math.exp %123 : vector<8x8xf32>
      %cst_54 = arith.constant dense<0.000000e+00> : vector<8xf32>
      %125 = vector.multi_reduction <add>, %124, %cst_54 [1] : vector<8x8xf32> to vector<8xf32>
      %126 = vector.shape_cast %125 : vector<8xf32> to vector<8x1xf32>
      %127 = tpu.reciprocal %126 {approx = true} : vector<8x1xf32> -> vector<8x1xf32>
      %128 = vector.broadcast %127 : vector<8x1xf32> to vector<8x8xf32>
      %129 = arith.mulf %124, %128 : vector<8x8xf32>
      %130 = arith.truncf %129 : vector<8x8xf32> to vector<8x8xbf16>
      %cst_55 = arith.constant dense<0.000000e+00> : vector<8x16xf32>
      %131 = tpu.matmul %130, %115, %cst_55 {dimension_numbers = #tpu.dot_dimension_numbers<[1], [0], [0], [1], [0, 0, 1, 1], [], []>} : vector<8x8xbf16>, vector<8x16xbf16>, vector<8x16xf32> -> vector<8x16xf32>
      %132 = vector.extract_strided_slice %45 {offsets = [0, 32], sizes = [8, 16], strides = [1, 1]} : vector<8x64xf32> to vector<8x16xf32>
      %133 = vector.extract_strided_slice %132 {offsets = [0, 0], sizes = [8, 8], strides = [1, 1]} : vector<8x16xf32> to vector<8x8xf32>
      %134 = vector.extract_strided_slice %132 {offsets = [0, 8], sizes = [8, 8], strides = [1, 1]} : vector<8x16xf32> to vector<8x8xf32>
      %cst_56 = arith.constant 0.000000e+00 : f32
      %135 = vector.broadcast %cst_56 : f32 to vector<8x8xf32>
      %136 = arith.subf %135, %134 : vector<8x8xf32>
      %137 = tpu.concatenate %136, %133 in 1 : vector<8x8xf32>, vector<8x8xf32> -> vector<8x16xf32>
      %138 = arith.mulf %132, %29 : vector<8x16xf32>
      %139 = arith.mulf %137, %30 : vector<8x16xf32>
      %140 = arith.addf %138, %139 : vector<8x16xf32>
      %141 = arith.truncf %140 : vector<8x16xf32> to vector<8x16xbf16>
      %142 = vector.extract_strided_slice %47 {offsets = [0, 32], sizes = [8, 16], strides = [1, 1]} : vector<8x64xf32> to vector<8x16xf32>
      %143 = vector.extract_strided_slice %142 {offsets = [0, 0], sizes = [8, 8], strides = [1, 1]} : vector<8x16xf32> to vector<8x8xf32>
      %144 = vector.extract_strided_slice %142 {offsets = [0, 8], sizes = [8, 8], strides = [1, 1]} : vector<8x16xf32> to vector<8x8xf32>
      %cst_57 = arith.constant 0.000000e+00 : f32
      %145 = vector.broadcast %cst_57 : f32 to vector<8x8xf32>
      %146 = arith.subf %145, %144 : vector<8x8xf32>
      %147 = tpu.concatenate %146, %143 in 1 : vector<8x8xf32>, vector<8x8xf32> -> vector<8x16xf32>
      %148 = arith.mulf %142, %29 : vector<8x16xf32>
      %149 = arith.mulf %147, %30 : vector<8x16xf32>
      %150 = arith.addf %148, %149 : vector<8x16xf32>
      %151 = arith.truncf %150 : vector<8x16xf32> to vector<8x16xbf16>
      %152 = vector.extract_strided_slice %49 {offsets = [0, 32], sizes = [8, 16], strides = [1, 1]} : vector<8x64xf32> to vector<8x16xf32>
      %153 = arith.truncf %152 : vector<8x16xf32> to vector<8x16xbf16>
      %cst_58 = arith.constant dense<0.000000e+00> : vector<8x8xf32>
      %154 = tpu.matmul %141, %151, %cst_58 {dimension_numbers = #tpu.dot_dimension_numbers<[1], [1], [0], [0], [0, 0, 1, 0], [], []>} : vector<8x16xbf16>, vector<8x16xbf16>, vector<8x8xf32> -> vector<8x8xf32>
      %cst_59 = arith.constant 2.500000e-01 : f32
      %155 = vector.broadcast %cst_59 : f32 to vector<8x8xf32>
      %156 = arith.mulf %154, %155 : vector<8x8xf32>
      %157 = arith.addf %156, %55 : vector<8x8xf32>
      %cst_60 = arith.constant dense<0xFF800000> : vector<8xf32>
      %158 = vector.multi_reduction <maximumf>, %157, %cst_60 [1] : vector<8x8xf32> to vector<8xf32>
      %159 = vector.shape_cast %158 : vector<8xf32> to vector<8x1xf32>
      %160 = vector.broadcast %159 : vector<8x1xf32> to vector<8x8xf32>
      %161 = arith.subf %157, %160 : vector<8x8xf32>
      %162 = math.exp %161 : vector<8x8xf32>
      %cst_61 = arith.constant dense<0.000000e+00> : vector<8xf32>
      %163 = vector.multi_reduction <add>, %162, %cst_61 [1] : vector<8x8xf32> to vector<8xf32>
      %164 = vector.shape_cast %163 : vector<8xf32> to vector<8x1xf32>
      %165 = tpu.reciprocal %164 {approx = true} : vector<8x1xf32> -> vector<8x1xf32>
      %166 = vector.broadcast %165 : vector<8x1xf32> to vector<8x8xf32>
      %167 = arith.mulf %162, %166 : vector<8x8xf32>
      %168 = arith.truncf %167 : vector<8x8xf32> to vector<8x8xbf16>
      %cst_62 = arith.constant dense<0.000000e+00> : vector<8x16xf32>
      %169 = tpu.matmul %168, %153, %cst_62 {dimension_numbers = #tpu.dot_dimension_numbers<[1], [0], [0], [1], [0, 0, 1, 1], [], []>} : vector<8x8xbf16>, vector<8x16xbf16>, vector<8x16xf32> -> vector<8x16xf32>
      %170 = vector.extract_strided_slice %45 {offsets = [0, 48], sizes = [8, 16], strides = [1, 1]} : vector<8x64xf32> to vector<8x16xf32>
      %171 = vector.extract_strided_slice %170 {offsets = [0, 0], sizes = [8, 8], strides = [1, 1]} : vector<8x16xf32> to vector<8x8xf32>
      %172 = vector.extract_strided_slice %170 {offsets = [0, 8], sizes = [8, 8], strides = [1, 1]} : vector<8x16xf32> to vector<8x8xf32>
      %cst_63 = arith.constant 0.000000e+00 : f32
      %173 = vector.broadcast %cst_63 : f32 to vector<8x8xf32>
      %174 = arith.subf %173, %172 : vector<8x8xf32>
      %175 = tpu.concatenate %174, %171 in 1 : vector<8x8xf32>, vector<8x8xf32> -> vector<8x16xf32>
      %176 = arith.mulf %170, %29 : vector<8x16xf32>
      %177 = arith.mulf %175, %30 : vector<8x16xf32>
      %178 = arith.addf %176, %177 : vector<8x16xf32>
      %179 = arith.truncf %178 : vector<8x16xf32> to vector<8x16xbf16>
      %180 = vector.extract_strided_slice %47 {offsets = [0, 48], sizes = [8, 16], strides = [1, 1]} : vector<8x64xf32> to vector<8x16xf32>
      %181 = vector.extract_strided_slice %180 {offsets = [0, 0], sizes = [8, 8], strides = [1, 1]} : vector<8x16xf32> to vector<8x8xf32>
      %182 = vector.extract_strided_slice %180 {offsets = [0, 8], sizes = [8, 8], strides = [1, 1]} : vector<8x16xf32> to vector<8x8xf32>
      %cst_64 = arith.constant 0.000000e+00 : f32
      %183 = vector.broadcast %cst_64 : f32 to vector<8x8xf32>
      %184 = arith.subf %183, %182 : vector<8x8xf32>
      %185 = tpu.concatenate %184, %181 in 1 : vector<8x8xf32>, vector<8x8xf32> -> vector<8x16xf32>
      %186 = arith.mulf %180, %29 : vector<8x16xf32>
      %187 = arith.mulf %185, %30 : vector<8x16xf32>
      %188 = arith.addf %186, %187 : vector<8x16xf32>
      %189 = arith.truncf %188 : vector<8x16xf32> to vector<8x16xbf16>
      %190 = vector.extract_strided_slice %49 {offsets = [0, 48], sizes = [8, 16], strides = [1, 1]} : vector<8x64xf32> to vector<8x16xf32>
      %191 = arith.truncf %190 : vector<8x16xf32> to vector<8x16xbf16>
      %cst_65 = arith.constant dense<0.000000e+00> : vector<8x8xf32>
      %192 = tpu.matmul %179, %189, %cst_65 {dimension_numbers = #tpu.dot_dimension_numbers<[1], [1], [0], [0], [0, 0, 1, 0], [], []>} : vector<8x16xbf16>, vector<8x16xbf16>, vector<8x8xf32> -> vector<8x8xf32>
      %cst_66 = arith.constant 2.500000e-01 : f32
      %193 = vector.broadcast %cst_66 : f32 to vector<8x8xf32>
      %194 = arith.mulf %192, %193 : vector<8x8xf32>
      %195 = arith.addf %194, %55 : vector<8x8xf32>
      %cst_67 = arith.constant dense<0xFF800000> : vector<8xf32>
      %196 = vector.multi_reduction <maximumf>, %195, %cst_67 [1] : vector<8x8xf32> to vector<8xf32>
      %197 = vector.shape_cast %196 : vector<8xf32> to vector<8x1xf32>
      %198 = vector.broadcast %197 : vector<8x1xf32> to vector<8x8xf32>
      %199 = arith.subf %195, %198 : vector<8x8xf32>
      %200 = math.exp %199 : vector<8x8xf32>
      %cst_68 = arith.constant dense<0.000000e+00> : vector<8xf32>
      %201 = vector.multi_reduction <add>, %200, %cst_68 [1] : vector<8x8xf32> to vector<8xf32>
      %202 = vector.shape_cast %201 : vector<8xf32> to vector<8x1xf32>
      %203 = tpu.reciprocal %202 {approx = true} : vector<8x1xf32> -> vector<8x1xf32>
      %204 = vector.broadcast %203 : vector<8x1xf32> to vector<8x8xf32>
      %205 = arith.mulf %200, %204 : vector<8x8xf32>
      %206 = arith.truncf %205 : vector<8x8xf32> to vector<8x8xbf16>
      %cst_69 = arith.constant dense<0.000000e+00> : vector<8x16xf32>
      %207 = tpu.matmul %206, %191, %cst_69 {dimension_numbers = #tpu.dot_dimension_numbers<[1], [0], [0], [1], [0, 0, 1, 1], [], []>} : vector<8x8xbf16>, vector<8x16xbf16>, vector<8x16xf32> -> vector<8x16xf32>
      %208 = tpu.concatenate %93, %131, %169, %207 in 1 : vector<8x16xf32>, vector<8x16xf32>, vector<8x16xf32>, vector<8x16xf32> -> vector<8x64xf32>
      %209 = arith.truncf %208 : vector<8x64xf32> to vector<8x64xbf16>
      %c0_70 = arith.constant 0 : index
      %c0_71 = arith.constant 0 : index
      %210 = vector.load %arg8[%c0_70, %c0_71] : memref<64x64xbf16, #tpu.memory_space<vmem>>, vector<64x64xbf16>
      %cst_72 = arith.constant dense<0.000000e+00> : vector<8x64xf32>
      %211 = tpu.matmul %209, %210, %cst_72 {dimension_numbers = #tpu.dot_dimension_numbers<[1], [0], [0], [1], [0, 0, 1, 1], [], []>} : vector<8x64xbf16>, vector<64x64xbf16>, vector<8x64xf32> -> vector<8x64xf32>
      %212 = arith.addf %42, %211 : vector<8x64xf32>
      %c0_73 = arith.constant 0 : index
      %c0_74 = arith.constant 0 : index
      %c0_75 = arith.constant 0 : index
      %213 = vector.load %arg14[%c0_73, %c0_74, %c0_75] : memref<1x8x64xf32, #tpu.memory_space<vmem>>, vector<1x8x64xf32>
      %214 = vector.shape_cast %213 : vector<1x8x64xf32> to vector<8x64xf32>
      %215 = vector.shape_cast %212 : vector<8x64xf32> to vector<1x8x64xf32>
      tpu.vector_store %arg14[%c0_73, %c0_74, %c0_75], %215 {strides = array<i32>} : memref<1x8x64xf32, #tpu.memory_space<vmem>>, vector<1x8x64xf32>,
      %216 = arith.mulf %212, %212 : vector<8x64xf32>
      %cst_76 = arith.constant dense<0.000000e+00> : vector<8xf32>
      %217 = vector.multi_reduction <add>, %216, %cst_76 [1] : vector<8x64xf32> to vector<8xf32>
      %218 = vector.shape_cast %217 : vector<8xf32> to vector<8x1xf32>
      %cst_77 = arith.constant 6.400000e+01 : f32
      %219 = vector.broadcast %cst_77 : f32 to vector<8x1xf32>
      %220 = arith.divf %218, %219 : vector<8x1xf32>
      %cst_78 = arith.constant 1.1920929E-7 : f32
      %221 = vector.broadcast %cst_78 : f32 to vector<8x1xf32>
      %222 = arith.addf %220, %221 : vector<8x1xf32>
      %223 = math.rsqrt %222 : vector<8x1xf32>
      %224 = vector.broadcast %223 : vector<8x1xf32> to vector<8x64xf32>
      %225 = arith.mulf %212, %224 : vector<8x64xf32>
      %226 = vector.broadcast %28 : vector<1x64xf32> to vector<8x64xf32>
      %227 = arith.mulf %225, %226 : vector<8x64xf32>
      %c0_79 = arith.constant 0 : index
      %c0_80 = arith.constant 0 : index
      %228 = vector.load %arg15[%c0_79, %c0_80] : memref<8x64xf32, #tpu.memory_space<vmem>>, vector<8x64xf32>
      tpu.vector_store %arg15[%c0_79, %c0_80], %227 {strides = array<i32>} : memref<8x64xf32, #tpu.memory_space<vmem>>, vector<8x64xf32>,
    } else {
    }
    %c0 = arith.constant 0 : index
    %c0_1 = arith.constant 0 : index
    %3 = vector.load %arg15[%c0, %c0_1] : memref<8x64xf32, #tpu.memory_space<vmem>>, vector<8x64xf32>
    %4 = arith.truncf %3 : vector<8x64xf32> to vector<8x64xbf16>
    %c0_2 = arith.constant 0 : index
    %c0_3 = arith.constant 0 : index
    %5 = vector.load %arg11[%c0_2, %c0_3] : memref<64x128xbf16, #tpu.memory_space<vmem>>, vector<64x128xbf16>
    %cst = arith.constant dense<0.000000e+00> : vector<8x128xf32>
    %6 = tpu.matmul %4, %5, %cst {dimension_numbers = #tpu.dot_dimension_numbers<[1], [0], [0], [1], [0, 0, 1, 1], [], []>} : vector<8x64xbf16>, vector<64x128xbf16>, vector<8x128xf32> -> vector<8x128xf32>
    %c0_4 = arith.constant 0 : index
    %c0_5 = arith.constant 0 : index
    %7 = vector.load %arg12[%c0_4, %c0_5] : memref<64x128xbf16, #tpu.memory_space<vmem>>, vector<64x128xbf16>
    %cst_6 = arith.constant dense<0.000000e+00> : vector<8x128xf32>
    %8 = tpu.matmul %4, %7, %cst_6 {dimension_numbers = #tpu.dot_dimension_numbers<[1], [0], [0], [1], [0, 0, 1, 1], [], []>} : vector<8x64xbf16>, vector<64x128xbf16>, vector<8x128xf32> -> vector<8x128xf32>
    %9 = arith.negf %6 : vector<8x128xf32>
    %10 = math.exp %9 : vector<8x128xf32>
    %cst_7 = arith.constant 1.000000e+00 : f32
    %11 = vector.broadcast %cst_7 : f32 to vector<8x128xf32>
    %12 = arith.addf %11, %10 : vector<8x128xf32>
    %13 = arith.divf %11, %12 : vector<8x128xf32>
    %14 = arith.mulf %6, %13 : vector<8x128xf32>
    %15 = arith.mulf %14, %8 : vector<8x128xf32>
    %c0_8 = arith.constant 0 : index
    %c0_9 = arith.constant 0 : index
    %c0_10 = arith.constant 0 : index
    %16 = vector.load %arg14[%c0_8, %c0_9, %c0_10] : memref<1x8x64xf32, #tpu.memory_space<vmem>>, vector<1x8x64xf32>
    %17 = vector.shape_cast %16 : vector<1x8x64xf32> to vector<8x64xf32>
    %18 = arith.truncf %15 : vector<8x128xf32> to vector<8x128xbf16>
    %c0_11 = arith.constant 0 : index
    %c0_12 = arith.constant 0 : index
    %19 = vector.load %arg13[%c0_11, %c0_12] : memref<128x64xbf16, #tpu.memory_space<vmem>>, vector<128x64xbf16>
    %cst_13 = arith.constant dense<0.000000e+00> : vector<8x64xf32>
    %20 = tpu.matmul %18, %19, %cst_13 {dimension_numbers = #tpu.dot_dimension_numbers<[1], [0], [0], [1], [0, 0, 1, 1], [], []>} : vector<8x128xbf16>, vector<128x64xbf16>, vector<8x64xf32> -> vector<8x64xf32>
    %21 = arith.addf %17, %20 : vector<8x64xf32>
    %c0_14 = arith.constant 0 : index
    %c0_15 = arith.constant 0 : index
    %c0_16 = arith.constant 0 : index
    %22 = vector.load %arg14[%c0_14, %c0_15, %c0_16] : memref<1x8x64xf32, #tpu.memory_space<vmem>>, vector<1x8x64xf32>
    %23 = vector.shape_cast %22 : vector<1x8x64xf32> to vector<8x64xf32>
    %24 = vector.shape_cast %21 : vector<8x64xf32> to vector<1x8x64xf32>
    tpu.vector_store %arg14[%c0_14, %c0_15, %c0_16], %24 {strides = array<i32>} : memref<1x8x64xf32, #tpu.memory_space<vmem>>, vector<1x8x64xf32>,
    return
  }
  func.func @transform_0(%arg0: i32, %arg1: i32) -> (i32, i32, i32) {
    %c0_i32 = arith.constant 0 : i32
    %c0_i32_0 = arith.constant 0 : i32
    %c0_i32_1 = arith.constant 0 : i32
    return %arg0, %c0_i32, %c0_i32_0 : i32, i32, i32
  }
  func.func @transform_1(%arg0: i32, %arg1: i32) -> (i32, i32) {
    %c0_i32 = arith.constant 0 : i32
    %c0_i32_0 = arith.constant 0 : i32
    %c0_i32_1 = arith.constant 0 : i32
    return %c0_i32, %c0_i32_0 : i32, i32
  }
  func.func @transform_2(%arg0: i32, %arg1: i32) -> (i32, i32) {
    %c0_i32 = arith.constant 0 : i32
    %c0_i32_0 = arith.constant 0 : i32
    %c0_i32_1 = arith.constant 0 : i32
    return %c0_i32, %c0_i32_0 : i32, i32
  }
  func.func @transform_3(%arg0: i32, %arg1: i32) -> (i32, i32) {
    %c0_i32 = arith.constant 0 : i32
    %c0_i32_0 = arith.constant 0 : i32
    %c0_i32_1 = arith.constant 0 : i32
    return %c0_i32, %c0_i32_0 : i32, i32
  }
  func.func @transform_4(%arg0: i32, %arg1: i32) -> (i32, i32) {
    %c0_i32 = arith.constant 0 : i32
    %c0_i32_0 = arith.constant 0 : i32
    %c0_i32_1 = arith.constant 0 : i32
    return %c0_i32, %c0_i32_0 : i32, i32
  }
  func.func @transform_5(%arg0: i32, %arg1: i32) -> (i32, i32) {
    %c0_i32 = arith.constant 0 : i32
    %c0_i32_0 = arith.constant 0 : i32
    %c0_i32_1 = arith.constant 0 : i32
    return %c0_i32, %c0_i32_0 : i32, i32
  }
  func.func @transform_6(%arg0: i32, %arg1: i32) -> (i32, i32) {
    %c0_i32 = arith.constant 0 : i32
    %c0_i32_0 = arith.constant 0 : i32
    %c0_i32_1 = arith.constant 0 : i32
    return %c0_i32, %c0_i32_0 : i32, i32
  }
  func.func @transform_7(%arg0: i32, %arg1: i32) -> (i32, i32) {
    %c0_i32 = arith.constant 0 : i32
    %c0_i32_0 = arith.constant 0 : i32
    %c0_i32_1 = arith.constant 0 : i32
    return %c0_i32, %c0_i32_0 : i32, i32
  }
  func.func @transform_8(%arg0: i32, %arg1: i32) -> (i32, i32) {
    %c0_i32 = arith.constant 0 : i32
    %c0_i32_0 = arith.constant 0 : i32
    %c0_i32_1 = arith.constant 0 : i32
    return %c0_i32, %c0_i32_0 : i32, i32
  }
  func.func @transform_9(%arg0: i32, %arg1: i32) -> (i32, i32) {
    %c0_i32 = arith.constant 0 : i32
    %c0_i32_0 = arith.constant 0 : i32
    return %c0_i32, %arg1 : i32, i32
  }
  func.func @transform_10(%arg0: i32, %arg1: i32) -> (i32, i32) {
    %c0_i32 = arith.constant 0 : i32
    %c0_i32_0 = arith.constant 0 : i32
    return %c0_i32, %arg1 : i32, i32
  }
  func.func @transform_11(%arg0: i32, %arg1: i32) -> (i32, i32) {
    %c0_i32 = arith.constant 0 : i32
    %c0_i32_0 = arith.constant 0 : i32
    return %arg1, %c0_i32 : i32, i32
  }
  func.func @transform_12(%arg0: i32, %arg1: i32) -> (i32, i32, i32) {
    %c0_i32 = arith.constant 0 : i32
    %c0_i32_0 = arith.constant 0 : i32
    %c0_i32_1 = arith.constant 0 : i32
    return %arg0, %c0_i32, %c0_i32_0 : i32, i32, i32
  }
}

</mosaic_0001>

<llo_original>
// kernel: tpu_custom_call.1
$region0: #{tpu_custom_call.1}
  #allocation0 [shape = 'u32[]', space=smem, size = 0x4, offset = 0x4, fixed_abs, tag = 'smem constant byte address 0x4 - core index']
  #allocation1 [shape = 'u32[144,128]{1,0:T(1,128)}', space=vmem, size = 0x12000, scoped, tag = 'internal scratch']
  #allocation2 [shape = 'f32[8,64]{1,0:T(8,128)}', space=vmem, size = 0x1000, scoped, tag = 'scratch operand']
  %s0 = inlined_call_operand.hbm [shape: f32[2,8,64], index: 0, kind: input, shape index: {}]
  %s1 = inlined_call_operand.vmem [shape: f32[1,64], index: 1, kind: input, shape index: {}]
  %s2 = inlined_call_operand.vmem [shape: f32[1,64], index: 2, kind: input, shape index: {}]
  %s3 = inlined_call_operand.vmem [shape: bf16[64,64], index: 3, kind: input, shape index: {}]
  %s4 = inlined_call_operand.vmem [shape: bf16[64,64], index: 4, kind: input, shape index: {}]
  %s5 = inlined_call_operand.hbm [shape: bf16[64,64], index: 5, kind: input, shape index: {}]
  %s6 = inlined_call_operand.hbm [shape: bf16[64,64], index: 6, kind: input, shape index: {}]
  %s7 = inlined_call_operand.vmem [shape: f32[8,16], index: 7, kind: input, shape index: {}]
  %s8 = inlined_call_operand.vmem [shape: f32[8,16], index: 8, kind: input, shape index: {}]
  %s9 = inlined_call_operand.vmem [shape: bf16[64,256], index: 9, kind: input, shape index: {}]
  %s10 = inlined_call_operand.vmem [shape: bf16[64,256], index: 10, kind: input, shape index: {}]
  %s11 = inlined_call_operand.vmem [shape: bf16[256,64], index: 11, kind: input, shape index: {}]
  %s12 = inlined_call_operand.hbm [shape: f32[2,8,64], index: 12, kind: output, shape index: {}]
  %s13 = sld [smem:[#allocation0]]
  $region179: #{tpu_custom_call.1} parent=0
    _
  %s15 = ssub.s32 1, %s13
  %s16 = scalar_select 0, %s15, %s13
  $region1: #{tpu_custom_call.1} parent=0
    #allocation3 [shape = 'u8[8192]{0}', space=vmem, size = 0x2000, scoped, tag = 'input window, operand 0']
    #allocation4 [shape = 's32[2]{0}', space=sflag, size = 0x8, scoped, tag = 'scoped memory for tpu_custom_call.1']
    #allocation5 [shape = 's32[2]{0}', space=sflag, size = 0x8, scoped, tag = 'scoped memory for tpu_custom_call.1']
    #allocation6 [shape = 'u8[16384]{0}', space=vmem, size = 0x4000, scoped, tag = 'input window, operand 5, single buffered']
    #allocation7 [shape = 's32[1]{0}', space=sflag, size = 0x4, scoped, tag = 'scoped memory for tpu_custom_call.1']
    #allocation8 [shape = 'u8[16384]{0}', space=vmem, size = 0x4000, scoped, tag = 'input window, operand 6, single buffered']
    #allocation9 [shape = 'u8[32768]{0}', space=vmem, size = 0x8000, scoped, tag = 'input window, operand 9']
    #allocation10 [shape = 'u8[32768]{0}', space=vmem, size = 0x8000, scoped, tag = 'input window, operand 10']
    #allocation11 [shape = 'u8[8192]{0}', space=vmem, size = 0x2000, scoped, tag = 'output window, operand 0']
    %17 = vsyncpa [#allocation4], 0
    %s18 = scalar_lea.sflag [#allocation4], 1
    %19 = vsyncpa %s18, 0
    %20 = vsyncpa [#allocation7], 0
    %21 = vsyncpa [#allocation5], 0
    %s22 = scalar_lea.sflag [#allocation5], 1
    %23 = vsyncpa %s22, 0
    loop: start=0, step=1, limit=6
    $region2: #{tpu_custom_call.1} parent=1 // loop_pre_header
      _
    $region3: #{tpu_custom_call.1} parent=1 // loop_header
      %s25 = sphi 0, %s29
      %p26 = scmp.ge.s32.totalorder %s25, 6
      %s32 = sphi 0, %s44
      %s33 = sphi 0, %s40
      %s34 = sphi 0, %s32
      %s35 = sphi 0, %s33
      %s36 = sphi 0, %s34
      %s37 = sphi 0, %s35
      %s47 = sphi 0, %s49
      %s50 = sphi 0, %s47
      %s51 = sphi 0, %s50
      %s67 = sphi 0, %s51
      %s71 = sphi 0, %s71
      %s73 = sphi 0, %s71
      %s74 = sphi 0, %s73
      %s88 = sphi 0, %s74
      %s92 = sphi 0, %s92
      %s94 = sphi 0, %s92
      %s95 = sphi 0, %s94
      %s109 = sphi 0, %s95
      %s113 = sphi 0, %s113
      %s115 = sphi 0, %s113
      %s116 = sphi 0, %s115
      %s130 = sphi 0, %s116
      %s134 = sphi 0, %s134
      %s136 = sphi 0, %s134
      %s137 = sphi 0, %s136
      %s151 = sphi 0, %s137
      %s155 = sphi 0, %s155
      %s157 = sphi 0, %s155
      %s158 = sphi 0, %s157
      %s172 = sphi 0, %s158
      %s176 = sphi 0, %s176
      %s178 = sphi 0, %s176
      %s179 = sphi 0, %s178
      %s193 = sphi 0, %s179
      %s197 = sphi 0, %s197
      %s199 = sphi 0, %s197
      %s200 = sphi 0, %s199
      %s214 = sphi 0, %s200
      %s218 = sphi 0, %s218
      %s220 = sphi 0, %s218
      %s221 = sphi 0, %s220
      %s235 = sphi 0, %s221
      %s241 = sphi 0, %s243
      %s244 = sphi 0, %s241
      %s245 = sphi 0, %s244
      %s261 = sphi 0, %s245
      %s267 = sphi 0, %s269
      %s270 = sphi 0, %s267
      %s271 = sphi 0, %s270
      %s287 = sphi 0, %s271
      %s293 = sphi 0, %s295
      %s296 = sphi 0, %s293
      %s297 = sphi 0, %s296
      %s313 = sphi 0, %s297
      %s319 = sphi 0, %s321
      %s322 = sphi 0, %s319
      %s323 = sphi 0, %s322
      %s339 = sphi 0, %s323
    $region4: #{tpu_custom_call.1} parent=1 // loop_header_branch
      %28 = sbr.rel (%p26) target = $region8
    $region5: #{tpu_custom_call.1} parent=1 // loop_body
      %s30 = ssub.s32 %s25, 1
      %s31 = ssub.s32 %s25, 2
      %s38 = sadd.s32 1, %s33
      %p39 = scmp.ge.s32.totalorder %s38, 2
      %s40 = scalar_select %p39, 0, %s38
      %s41 = sadd.s32 1, %s32
      %s42 = scalar_select %p39, %s41, %s32
      %p43 = scmp.ge.s32.totalorder %s42, 2
      %s44 = scalar_select %p43, 0, %s42
      %s45 = ssub.s32 %s32, %s44
      %p46 = scmp.eq.s32.totalorder %s45, 0
      %s48 = sadd.s32 %s47, 1
      %s49 = scalar_select %p46, %s47, %s48
      %p52 = pneg %p46
      %p53 = scmp.eq.s32.totalorder %s25, 3
      %p54 = por %p52, %p53
      %p55 = scmp.ne.s32.totalorder %s47, %s50
      %p56 = scmp.eq.s32.totalorder %s25, 0
      %p57 = por %p55, %p56
      %p58 = scmp.ne.s32.totalorder %s47, %s50
      %p59 = scmp.eq.s32.totalorder %s30, 3
      %p60 = por %p58, %p59
      %p61 = scmp.ne.s32.totalorder %s50, %s51
      %p62 = scmp.eq.s32.totalorder %s30, 0
      %p63 = por %p61, %p62
      %p64 = scmp.ne.s32.totalorder %s50, %s51
      %p65 = scmp.eq.s32.totalorder %s31, 3
      %p66 = por %p64, %p65
      %p68 = scmp.ne.s32.totalorder %s51, %s67
      %p69 = scmp.eq.s32.totalorder %s31, 0
      %p70 = por %p68, %p69
      %s72 = sadd.s32 %s71, 1
      %p75 = scmp.eq.s32.totalorder %s25, 3
      %p76 = scmp.ne.s32.totalorder %s71, %s73
      %p77 = scmp.eq.s32.totalorder %s25, 0
      %p78 = por %p76, %p77
      %p79 = scmp.ne.s32.totalorder %s71, %s73
      %p80 = scmp.eq.s32.totalorder %s30, 3
      %p81 = por %p79, %p80
      %p82 = scmp.ne.s32.totalorder %s73, %s74
      %p83 = scmp.eq.s32.totalorder %s30, 0
      %p84 = por %p82, %p83
      %p85 = scmp.ne.s32.totalorder %s73, %s74
      %p86 = scmp.eq.s32.totalorder %s31, 3
      %p87 = por %p85, %p86
      %p89 = scmp.ne.s32.totalorder %s74, %s88
      %p90 = scmp.eq.s32.totalorder %s31, 0
      %p91 = por %p89, %p90
      %s93 = sadd.s32 %s92, 1
      %p96 = scmp.eq.s32.totalorder %s25, 3
      %p97 = scmp.ne.s32.totalorder %s92, %s94
      %p98 = scmp.eq.s32.totalorder %s25, 0
      %p99 = por %p97, %p98
      %p100 = scmp.ne.s32.totalorder %s92, %s94
      %p101 = scmp.eq.s32.totalorder %s30, 3
      %p102 = por %p100, %p101
      %p103 = scmp.ne.s32.totalorder %s94, %s95
      %p104 = scmp.eq.s32.totalorder %s30, 0
      %p105 = por %p103, %p104
      %p106 = scmp.ne.s32.totalorder %s94, %s95
      %p107 = scmp.eq.s32.totalorder %s31, 3
      %p108 = por %p106, %p107
      %p110 = scmp.ne.s32.totalorder %s95, %s109
      %p111 = scmp.eq.s32.totalorder %s31, 0
      %p112 = por %p110, %p111
      %s114 = sadd.s32 %s113, 1
      %p117 = scmp.eq.s32.totalorder %s25, 3
      %p118 = scmp.ne.s32.totalorder %s113, %s115
      %p119 = scmp.eq.s32.totalorder %s25, 0
      %p120 = por %p118, %p119
      %p121 = scmp.ne.s32.totalorder %s113, %s115
      %p122 = scmp.eq.s32.totalorder %s30, 3
      %p123 = por %p121, %p122
      %p124 = scmp.ne.s32.totalorder %s115, %s116
      %p125 = scmp.eq.s32.totalorder %s30, 0
      %p126 = por %p124, %p125
      %p127 = scmp.ne.s32.totalorder %s115, %s116
      %p128 = scmp.eq.s32.totalorder %s31, 3
      %p129 = por %p127, %p128
      %p131 = scmp.ne.s32.totalorder %s116, %s130
      %p132 = scmp.eq.s32.totalorder %s31, 0
      %p133 = por %p131, %p132
      %s135 = sadd.s32 %s134, 1
      %p138 = scmp.eq.s32.totalorder %s25, 3
      %p139 = scmp.ne.s32.totalorder %s134, %s136
      %p140 = scmp.eq.s32.totalorder %s25, 0
      %p141 = por %p139, %p140
      %p142 = scmp.ne.s32.totalorder %s134, %s136
      %p143 = scmp.eq.s32.totalorder %s30, 3
      %p144 = por %p142, %p143
      %p145 = scmp.ne.s32.totalorder %s136, %s137
      %p146 = scmp.eq.s32.totalorder %s30, 0
      %p147 = por %p145, %p146
      %p148 = scmp.ne.s32.totalorder %s136, %s137
      %p149 = scmp.eq.s32.totalorder %s31, 3
      %p150 = por %p148, %p149
      %p152 = scmp.ne.s32.totalorder %s137, %s151
      %p153 = scmp.eq.s32.totalorder %s31, 0
      %p154 = por %p152, %p153
      %s156 = sadd.s32 %s155, 1
      %p159 = scmp.eq.s32.totalorder %s25, 3
      %p160 = scmp.ne.s32.totalorder %s155, %s157
      %p161 = scmp.eq.s32.totalorder %s25, 0
      %p162 = por %p160, %p161
      %p163 = scmp.ne.s32.totalorder %s155, %s157
      %p164 = scmp.eq.s32.totalorder %s30, 3
      %p165 = por %p163, %p164
      %p166 = scmp.ne.s32.totalorder %s157, %s158
      %p167 = scmp.eq.s32.totalorder %s30, 0
      %p168 = por %p166, %p167
      %p169 = scmp.ne.s32.totalorder %s157, %s158
      %p170 = scmp.eq.s32.totalorder %s31, 3
      %p171 = por %p169, %p170
      %p173 = scmp.ne.s32.totalorder %s158, %s172
      %p174 = scmp.eq.s32.totalorder %s31, 0
      %p175 = por %p173, %p174
      %s177 = sadd.s32 %s176, 1
      %p180 = scmp.eq.s32.totalorder %s25, 3
      %p181 = scmp.ne.s32.totalorder %s176, %s178
      %p182 = scmp.eq.s32.totalorder %s25, 0
      %p183 = por %p181, %p182
      %p184 = scmp.ne.s32.totalorder %s176, %s178
      %p185 = scmp.eq.s32.totalorder %s30, 3
      %p186 = por %p184, %p185
      %p187 = scmp.ne.s32.totalorder %s178, %s179
      %p188 = scmp.eq.s32.totalorder %s30, 0
      %p189 = por %p187, %p188
      %p190 = scmp.ne.s32.totalorder %s178, %s179
      %p191 = scmp.eq.s32.totalorder %s31, 3
      %p192 = por %p190, %p191
      %p194 = scmp.ne.s32.totalorder %s179, %s193
      %p195 = scmp.eq.s32.totalorder %s31, 0
      %p196 = por %p194, %p195
      %s198 = sadd.s32 %s197, 1
      %p201 = scmp.eq.s32.totalorder %s25, 3
      %p202 = scmp.ne.s32.totalorder %s197, %s199
      %p203 = scmp.eq.s32.totalorder %s25, 0
      %p204 = por %p202, %p203
      %p205 = scmp.ne.s32.totalorder %s197, %s199
      %p206 = scmp.eq.s32.totalorder %s30, 3
      %p207 = por %p205, %p206
      %p208 = scmp.ne.s32.totalorder %s199, %s200
      %p209 = scmp.eq.s32.totalorder %s30, 0
      %p210 = por %p208, %p209
      %p211 = scmp.ne.s32.totalorder %s199, %s200
      %p212 = scmp.eq.s32.totalorder %s31, 3
      %p213 = por %p211, %p212
      %p215 = scmp.ne.s32.totalorder %s200, %s214
      %p216 = scmp.eq.s32.totalorder %s31, 0
      %p217 = por %p215, %p216
      %s219 = sadd.s32 %s218, 1
      %p222 = scmp.eq.s32.totalorder %s25, 3
      %p223 = scmp.ne.s32.totalorder %s218, %s220
      %p224 = scmp.eq.s32.totalorder %s25, 0
      %p225 = por %p223, %p224
      %p226 = scmp.ne.s32.totalorder %s218, %s220
      %p227 = scmp.eq.s32.totalorder %s30, 3
      %p228 = por %p226, %p227
      %p229 = scmp.ne.s32.totalorder %s220, %s221
      %p230 = scmp.eq.s32.totalorder %s30, 0
      %p231 = por %p229, %p230
      %p232 = scmp.ne.s32.totalorder %s220, %s221
      %p233 = scmp.eq.s32.totalorder %s31, 3
      %p234 = por %p232, %p233
      %p236 = scmp.ne.s32.totalorder %s221, %s235
      %p237 = scmp.eq.s32.totalorder %s31, 0
      %p238 = por %p236, %p237
      %s239 = ssub.s32 %s33, %s40
      %p240 = scmp.eq.s32.totalorder %s239, 0
      %s242 = sadd.s32 %s241, 1
      %s243 = scalar_select %p240, %s241, %s242
      %p246 = pneg %p240
      %p247 = scmp.eq.s32.totalorder %s25, 3
      %p248 = por %p246, %p247
      %p249 = scmp.ne.s32.totalorder %s241, %s244
      %p250 = scmp.eq.s32.totalorder %s25, 0
      %p251 = por %p249, %p250
      %p252 = scmp.ne.s32.totalorder %s241, %s244
      %p253 = scmp.eq.s32.totalorder %s30, 3
      %p254 = por %p252, %p253
      %p255 = scmp.ne.s32.totalorder %s244, %s245
      %p256 = scmp.eq.s32.totalorder %s30, 0
      %p257 = por %p255, %p256
      %p258 = scmp.ne.s32.totalorder %s244, %s245
      %p259 = scmp.eq.s32.totalorder %s31, 3
      %p260 = por %p258, %p259
      %p262 = scmp.ne.s32.totalorder %s245, %s261
      %p263 = scmp.eq.s32.totalorder %s31, 0
      %p264 = por %p262, %p263
      %s265 = ssub.s32 %s33, %s40
      %p266 = scmp.eq.s32.totalorder %s265, 0
      %s268 = sadd.s32 %s267, 1
      %s269 = scalar_select %p266, %s267, %s268
      %p272 = pneg %p266
      %p273 = scmp.eq.s32.totalorder %s25, 3
      %p274 = por %p272, %p273
      %p275 = scmp.ne.s32.totalorder %s267, %s270
      %p276 = scmp.eq.s32.totalorder %s25, 0
      %p277 = por %p275, %p276
      %p278 = scmp.ne.s32.totalorder %s267, %s270
      %p279 = scmp.eq.s32.totalorder %s30, 3
      %p280 = por %p278, %p279
      %p281 = scmp.ne.s32.totalorder %s270, %s271
      %p282 = scmp.eq.s32.totalorder %s30, 0
      %p283 = por %p281, %p282
      %p284 = scmp.ne.s32.totalorder %s270, %s271
      %p285 = scmp.eq.s32.totalorder %s31, 3
      %p286 = por %p284, %p285
      %p288 = scmp.ne.s32.totalorder %s271, %s287
      %p289 = scmp.eq.s32.totalorder %s31, 0
      %p290 = por %p288, %p289
      %s291 = ssub.s32 %s33, %s40
      %p292 = scmp.eq.s32.totalorder %s291, 0
      %s294 = sadd.s32 %s293, 1
      %s295 = scalar_select %p292, %s293, %s294
      %p298 = pneg %p292
      %p299 = scmp.eq.s32.totalorder %s25, 3
      %p300 = por %p298, %p299
      %p301 = scmp.ne.s32.totalorder %s293, %s296
      %p302 = scmp.eq.s32.totalorder %s25, 0
      %p303 = por %p301, %p302
      %p304 = scmp.ne.s32.totalorder %s293, %s296
      %p305 = scmp.eq.s32.totalorder %s30, 3
      %p306 = por %p304, %p305
      %p307 = scmp.ne.s32.totalorder %s296, %s297
      %p308 = scmp.eq.s32.totalorder %s30, 0
      %p309 = por %p307, %p308
      %p310 = scmp.ne.s32.totalorder %s296, %s297
      %p311 = scmp.eq.s32.totalorder %s31, 3
      %p312 = por %p310, %p311
      %p314 = scmp.ne.s32.totalorder %s297, %s313
      %p315 = scmp.eq.s32.totalorder %s31, 0
      %p316 = por %p314, %p315
      %s317 = ssub.s32 %s32, %s44
      %p318 = scmp.eq.s32.totalorder %s317, 0
      %s320 = sadd.s32 %s319, 1
      %s321 = scalar_select %p318, %s319, %s320
      %p324 = pneg %p318
      %p325 = scmp.eq.s32.totalorder %s25, 3
      %p326 = por %p324, %p325
      %p327 = scmp.ne.s32.totalorder %s319, %s322
      %p328 = scmp.eq.s32.totalorder %s25, 0
      %p329 = por %p327, %p328
      %p330 = scmp.ne.s32.totalorder %s319, %s322
      %p331 = scmp.eq.s32.totalorder %s30, 3
      %p332 = por %p330, %p331
      %p333 = scmp.ne.s32.totalorder %s322, %s323
      %p334 = scmp.eq.s32.totalorder %s30, 0
      %p335 = por %p333, %p334
      %p336 = scmp.ne.s32.totalorder %s322, %s323
      %p337 = scmp.eq.s32.totalorder %s31, 3
      %p338 = por %p336, %p337
      %p340 = scmp.ne.s32.totalorder %s323, %s339
      %p341 = scmp.eq.s32.totalorder %s31, 0
      %p342 = por %p340, %p341
      %p343 = scmp.le.s32.totalorder 1, %s25
      %p344 = scmp.lt.s32.totalorder %s25, 5
      %p345 = pnand %p343, %p344
      %p346 = pneg %p345
      // Predicated region
      $region9: #{tpu_custom_call.1} parent=5 // pred_check
        _
      $region10: #{tpu_custom_call.1} parent=5 // pred_check_branch
        %348 = sbr.rel (%p345) target = $region12
      $region11: #{tpu_custom_call.1} parent=5 // pred_region
        %s349 = ssub.s32 %s25, 1
        // Predicated region
        $region13: #{tpu_custom_call.1} parent=11 // pred_check
          %p350 = pneg %p84
        $region14: #{tpu_custom_call.1} parent=11 // pred_check_branch
          %352 = sbr.rel (%p350) target = $region16
        $region15: #{tpu_custom_call.1} parent=11 // pred_region
          _
        $region16: #{tpu_custom_call.1} parent=11 // pred_fallthru
          _
        // Predicated region
        $region17: #{tpu_custom_call.1} parent=11 // pred_check
          %p353 = pneg %p105
        $region18: #{tpu_custom_call.1} parent=11 // pred_check_branch
          %355 = sbr.rel (%p353) target = $region20
        $region19: #{tpu_custom_call.1} parent=11 // pred_region
          _
        $region20: #{tpu_custom_call.1} parent=11 // pred_fallthru
          _
        // Predicated region
        $region21: #{tpu_custom_call.1} parent=11 // pred_check
          %p356 = pneg %p126
        $region22: #{tpu_custom_call.1} parent=11 // pred_check_branch
          %358 = sbr.rel (%p356) target = $region24
        $region23: #{tpu_custom_call.1} parent=11 // pred_region
          _
        $region24: #{tpu_custom_call.1} parent=11 // pred_fallthru
          _
        // Predicated region
        $region25: #{tpu_custom_call.1} parent=11 // pred_check
          %p359 = pneg %p147
        $region26: #{tpu_custom_call.1} parent=11 // pred_check_branch
          %361 = sbr.rel (%p359) target = $region28
        $region27: #{tpu_custom_call.1} parent=11 // pred_region
          _
        $region28: #{tpu_custom_call.1} parent=11 // pred_fallthru
          _
        // Predicated region
        $region29: #{tpu_custom_call.1} parent=11 // pred_check
          %p362 = pneg %p168
        $region30: #{tpu_custom_call.1} parent=11 // pred_check_branch
          %364 = sbr.rel (%p362) target = $region32
        $region31: #{tpu_custom_call.1} parent=11 // pred_region
          %s366 = ssub.s32 512, 512
          %367 = vsyncadd [#allocation7], %s366
          %s368 = sshll.u32 [#allocation6], 4
          %s369 = int_to_ptr.vmem [resolvable:$true] %s368
          %374 = dma.hbm_to_vmem [thread:$0]  %s5, 512, %s369, [#allocation7], 64, 64, 4
        $region32: #{tpu_custom_call.1} parent=11 // pred_fallthru
          _
        // Predicated region
        $region33: #{tpu_custom_call.1} parent=11 // pred_check
          %p375 = pneg %p189
        $region34: #{tpu_custom_call.1} parent=11 // pred_check_branch
          %377 = sbr.rel (%p375) target = $region36
        $region35: #{tpu_custom_call.1} parent=11 // pred_region
          %s379 = ssub.s32 512, 512
          %380 = vsyncadd [#allocation7], %s379
          %s381 = sshll.u32 [#allocation8], 4
          %s382 = int_to_ptr.vmem [resolvable:$true] %s381
          %387 = dma.hbm_to_vmem [thread:$0]  %s6, 512, %s382, [#allocation7], 64, 64, 4
        $region36: #{tpu_custom_call.1} parent=11 // pred_fallthru
          _
        // Predicated region
        $region37: #{tpu_custom_call.1} parent=11 // pred_check
          %p388 = pneg %p210
        $region38: #{tpu_custom_call.1} parent=11 // pred_check_branch
          %390 = sbr.rel (%p388) target = $region40
        $region39: #{tpu_custom_call.1} parent=11 // pred_region
          _
        $region40: #{tpu_custom_call.1} parent=11 // pred_fallthru
          _
        // Predicated region
        $region41: #{tpu_custom_call.1} parent=11 // pred_check
          %p391 = pneg %p231
        $region42: #{tpu_custom_call.1} parent=11 // pred_check_branch
          %393 = sbr.rel (%p391) target = $region44
        $region43: #{tpu_custom_call.1} parent=11 // pred_region
          _
        $region44: #{tpu_custom_call.1} parent=11 // pred_fallthru
          _
      $region12: #{tpu_custom_call.1} parent=5 // pred_fallthru
        _
      %p394 = scmp.lt.s32.totalorder %s25, 4
      // Predicated region
      $region45: #{tpu_custom_call.1} parent=5 // pred_check
        %p395 = pneg %p394
      $region46: #{tpu_custom_call.1} parent=5 // pred_check_branch
        %397 = sbr.rel (%p395) target = $region48
      $region47: #{tpu_custom_call.1} parent=5 // pred_region
        // Predicated region
        $region49: #{tpu_custom_call.1} parent=47 // pred_check
          %p398 = pneg %p57
        $region50: #{tpu_custom_call.1} parent=47 // pred_check_branch
          %400 = sbr.rel (%p398) target = $region52
        $region51: #{tpu_custom_call.1} parent=47 // pred_region
          %s401 = sand.u32 %s47, 1
          %s402 = scalar_lea.sflag [#allocation4], %s401
          %s403 = sand.u32 %s47, 1
          %s404 = smul.addr %s403, 8
          %s405 = scalar_lea.vmem [#allocation3], %s404
          %s407 = ssub.s32 128, 128
          %408 = vsyncadd %s402, %s407
          %s409 = smul.addr %s32, 128
          %s410 = scalar_lea.hbm %s0, %s409
          %s412 = sshll.u32 %s405, 4
          %s413 = int_to_ptr.vmem [resolvable:$true] %s412
          %415 = dma.hbm_to_vmem [thread:$0]  %s410, 128, %s413, %s402
        $region52: #{tpu_custom_call.1} parent=47 // pred_fallthru
          _
        // Predicated region
        $region53: #{tpu_custom_call.1} parent=47 // pred_check
          %p416 = pneg %p251
        $region54: #{tpu_custom_call.1} parent=47 // pred_check_branch
          %418 = sbr.rel (%p416) target = $region56
        $region55: #{tpu_custom_call.1} parent=47 // pred_region
          %s419 = sand.u32 %s241, 1
          %s420 = sand.u32 %s241, 1
          %s421 = smul.addr %s420, 32
          %s422 = scalar_lea.vmem [#allocation9], %s421
          %s423 = smul.addr %s33, 4
          %s424 = scalar_lea.vmem %s9, %s423
          // Predicated region
          $region57: #{tpu_custom_call.1} parent=55 // pred_check
            _
          $region58: #{tpu_custom_call.1} parent=55 // pred_check_branch
            %426 = sbr.rel (0) target = $region60
          $region59: #{tpu_custom_call.1} parent=55 // pred_region
            // Predicated region
            $region61: #{tpu_custom_call.1} parent=59 // pred_check
              _
            $region62: #{tpu_custom_call.1} parent=59 // pred_check_branch
              %428 = sbr.rel target = $region64
            $region63: #{tpu_custom_call.1} parent=59 // pred_region
              // Predicated region
              $region76: #{tpu_custom_call.1} parent=63 // pred_check
                _
              $region77: #{tpu_custom_call.1} parent=63 // pred_check_branch
                %457 = sbr.rel (0) target = $region79
              $region78: #{tpu_custom_call.1} parent=63 // pred_region
                loop: start=0, step=1, limit=1
                $region80: #{tpu_custom_call.1} parent=78 // loop_pre_header
                  _
                $region81: #{tpu_custom_call.1} parent=78 // loop_header
                  %s459 = sphi 0, %s463
                  %p460 = scmp.ge.s32.totalorder %s459, 1
                  %s464 = sphi %s424, %s424
                  %s465 = sphi %s422, %s422
                $region82: #{tpu_custom_call.1} parent=78 // loop_header_branch
                  %462 = sbr.rel (%p460) target = $region86
                $region83: #{tpu_custom_call.1} parent=78 // loop_body
                  _
                $region84: #{tpu_custom_call.1} parent=78 // loop_footer
                  %s463 = sadd.s32 1, %s459
                $region85: #{tpu_custom_call.1} parent=78 // loop_footer_branch
                  %458 = sbr.rel target = $region81
                $region86: #{tpu_custom_call.1} parent=78 // loop_exit
                  _
                loop: start=0, step=1, limit=1
                $region87: #{tpu_custom_call.1} parent=78 // loop_pre_header
                  _
                $region88: #{tpu_custom_call.1} parent=78 // loop_header
                  %s468 = sphi 0, %s472
                  %p469 = scmp.ge.s32.totalorder %s468, 1
                  %s473 = sphi %s424, %s424
                  %s474 = sphi %s422, %s422
                $region89: #{tpu_custom_call.1} parent=78 // loop_header_branch
                  %471 = sbr.rel (%p469) target = $region93
                $region90: #{tpu_custom_call.1} parent=78 // loop_body
                  %v475 = vld [vmem:[%s473] sm:$0xf]
                  %476 = vst [vmem:[%s474] sm:$0xf] %v475
                  %v477 = vld [vmem:[%s473 + $0x8] sm:$0xf]
                  %478 = vst [vmem:[%s474 + $0x4] sm:$0xf] %v477
                  %v479 = vld [vmem:[%s473 + $0x10] sm:$0xf]
                  %480 = vst [vmem:[%s474 + $0x8] sm:$0xf] %v479
                  %v481 = vld [vmem:[%s473 + $0x18] sm:$0xf]
                  %482 = vst [vmem:[%s474 + $0xc] sm:$0xf] %v481
                  %v483 = vld [vmem:[%s473 + $0x20] sm:$0xf]
                  %484 = vst [vmem:[%s474 + $0x10] sm:$0xf] %v483
                  %v485 = vld [vmem:[%s473 + $0x28] sm:$0xf]
                  %486 = vst [vmem:[%s474 + $0x14] sm:$0xf] %v485
                  %v487 = vld [vmem:[%s473 + $0x30] sm:$0xf]
                  %488 = vst [vmem:[%s474 + $0x18] sm:$0xf] %v487
                  %v489 = vld [vmem:[%s473 + $0x38] sm:$0xf]
                  %490 = vst [vmem:[%s474 + $0x1c] sm:$0xf] %v489
                $region91: #{tpu_custom_call.1} parent=78 // loop_footer
                  %s472 = sadd.s32 1, %s468
                $region92: #{tpu_custom_call.1} parent=78 // loop_footer_branch
                  %467 = sbr.rel target = $region88
                $region93: #{tpu_custom_call.1} parent=78 // loop_exit
                  _
              $region79: #{tpu_custom_call.1} parent=63 // pred_fallthru
                _
            $region64: #{tpu_custom_call.1} parent=59 // pred_fallthru
              _
            // Predicated region
            $region65: #{tpu_custom_call.1} parent=59 // pred_check
              _
            $region66: #{tpu_custom_call.1} parent=59 // pred_check_branch
              %430 = sbr.rel (0) target = $region68
            $region67: #{tpu_custom_call.1} parent=59 // pred_region
              loop: start=0, step=1, limit=1
              $region69: #{tpu_custom_call.1} parent=67 // loop_pre_header
                _
              $region70: #{tpu_custom_call.1} parent=67 // loop_header
                %s433 = sphi 0, %s437
                %p434 = scmp.ge.s32.totalorder %s433, 1
                %s438 = sphi %s424, %s424
                %s439 = sphi %s422, %s422
              $region71: #{tpu_custom_call.1} parent=67 // loop_header_branch
                %436 = sbr.rel (%p434) target = $region75
              $region72: #{tpu_custom_call.1} parent=67 // loop_body
                %v440 = vld [vmem:[%s438] sm:$0xf]
                %441 = vst [vmem:[%s439] sm:$0xf] %v440
                %v442 = vld [vmem:[%s438 + $0x8] sm:$0xf]
                %443 = vst [vmem:[%s439 + $0x4] sm:$0xf] %v442
                %v444 = vld [vmem:[%s438 + $0x10] sm:$0xf]
                %445 = vst [vmem:[%s439 + $0x8] sm:$0xf] %v444
                %v446 = vld [vmem:[%s438 + $0x18] sm:$0xf]
                %447 = vst [vmem:[%s439 + $0xc] sm:$0xf] %v446
                %v448 = vld [vmem:[%s438 + $0x20] sm:$0xf]
                %449 = vst [vmem:[%s439 + $0x10] sm:$0xf] %v448
                %v450 = vld [vmem:[%s438 + $0x28] sm:$0xf]
                %451 = vst [vmem:[%s439 + $0x14] sm:$0xf] %v450
                %v452 = vld [vmem:[%s438 + $0x30] sm:$0xf]
                %453 = vst [vmem:[%s439 + $0x18] sm:$0xf] %v452
                %v454 = vld [vmem:[%s438 + $0x38] sm:$0xf]
                %455 = vst [vmem:[%s439 + $0x1c] sm:$0xf] %v454
              $region73: #{tpu_custom_call.1} parent=67 // loop_footer
                %s437 = sadd.s32 1, %s433
              $region74: #{tpu_custom_call.1} parent=67 // loop_footer_branch
                %432 = sbr.rel target = $region70
              $region75: #{tpu_custom_call.1} parent=67 // loop_exit
                _
            $region68: #{tpu_custom_call.1} parent=59 // pred_fallthru
              _
          $region60: #{tpu_custom_call.1} parent=55 // pred_fallthru
            _
          %491 = vnop
        $region56: #{tpu_custom_call.1} parent=47 // pred_fallthru
          _
        // Predicated region
        $region94: #{tpu_custom_call.1} parent=47 // pred_check
          %p492 = pneg %p277
        $region95: #{tpu_custom_call.1} parent=47 // pred_check_branch
          %494 = sbr.rel (%p492) target = $region97
        $region96: #{tpu_custom_call.1} parent=47 // pred_region
          %s495 = sand.u32 %s267, 1
          %s496 = sand.u32 %s267, 1
          %s497 = smul.addr %s496, 32
          %s498 = scalar_lea.vmem [#allocation10], %s497
          %s499 = smul.addr %s33, 4
          %s500 = scalar_lea.vmem %s10, %s499
          // Predicated region
          $region98: #{tpu_custom_call.1} parent=96 // pred_check
            _
          $region99: #{tpu_custom_call.1} parent=96 // pred_check_branch
            %502 = sbr.rel (0) target = $region101
          $region100: #{tpu_custom_call.1} parent=96 // pred_region
            // Predicated region
            $region102: #{tpu_custom_call.1} parent=100 // pred_check
              _
            $region103: #{tpu_custom_call.1} parent=100 // pred_check_branch
              %504 = sbr.rel target = $region105
            $region104: #{tpu_custom_call.1} parent=100 // pred_region
              // Predicated region
              $region117: #{tpu_custom_call.1} parent=104 // pred_check
                _
              $region118: #{tpu_custom_call.1} parent=104 // pred_check_branch
                %533 = sbr.rel (0) target = $region120
              $region119: #{tpu_custom_call.1} parent=104 // pred_region
                loop: start=0, step=1, limit=1
                $region121: #{tpu_custom_call.1} parent=119 // loop_pre_header
                  _
                $region122: #{tpu_custom_call.1} parent=119 // loop_header
                  %s535 = sphi 0, %s539
                  %p536 = scmp.ge.s32.totalorder %s535, 1
                  %s540 = sphi %s500, %s500
                  %s541 = sphi %s498, %s498
                $region123: #{tpu_custom_call.1} parent=119 // loop_header_branch
                  %538 = sbr.rel (%p536) target = $region127
                $region124: #{tpu_custom_call.1} parent=119 // loop_body
                  _
                $region125: #{tpu_custom_call.1} parent=119 // loop_footer
                  %s539 = sadd.s32 1, %s535
                $region126: #{tpu_custom_call.1} parent=119 // loop_footer_branch
                  %534 = sbr.rel target = $region122
                $region127: #{tpu_custom_call.1} parent=119 // loop_exit
                  _
                loop: start=0, step=1, limit=1
                $region128: #{tpu_custom_call.1} parent=119 // loop_pre_header
                  _
                $region129: #{tpu_custom_call.1} parent=119 // loop_header
                  %s544 = sphi 0, %s548
                  %p545 = scmp.ge.s32.totalorder %s544, 1
                  %s549 = sphi %s500, %s500
                  %s550 = sphi %s498, %s498
                $region130: #{tpu_custom_call.1} parent=119 // loop_header_branch
                  %547 = sbr.rel (%p545) target = $region134
                $region131: #{tpu_custom_call.1} parent=119 // loop_body
                  %v551 = vld [vmem:[%s549] sm:$0xf]
                  %552 = vst [vmem:[%s550] sm:$0xf] %v551
                  %v553 = vld [vmem:[%s549 + $0x8] sm:$0xf]
                  %554 = vst [vmem:[%s550 + $0x4] sm:$0xf] %v553
                  %v555 = vld [vmem:[%s549 + $0x10] sm:$0xf]
                  %556 = vst [vmem:[%s550 + $0x8] sm:$0xf] %v555
                  %v557 = vld [vmem:[%s549 + $0x18] sm:$0xf]
                  %558 = vst [vmem:[%s550 + $0xc] sm:$0xf] %v557
                  %v559 = vld [vmem:[%s549 + $0x20] sm:$0xf]
                  %560 = vst [vmem:[%s550 + $0x10] sm:$0xf] %v559
                  %v561 = vld [vmem:[%s549 + $0x28] sm:$0xf]
                  %562 = vst [vmem:[%s550 + $0x14] sm:$0xf] %v561
                  %v563 = vld [vmem:[%s549 + $0x30] sm:$0xf]
                  %564 = vst [vmem:[%s550 + $0x18] sm:$0xf] %v563
                  %v565 = vld [vmem:[%s549 + $0x38] sm:$0xf]
                  %566 = vst [vmem:[%s550 + $0x1c] sm:$0xf] %v565
                $region132: #{tpu_custom_call.1} parent=119 // loop_footer
                  %s548 = sadd.s32 1, %s544
                $region133: #{tpu_custom_call.1} parent=119 // loop_footer_branch
                  %543 = sbr.rel target = $region129
                $region134: #{tpu_custom_call.1} parent=119 // loop_exit
                  _
              $region120: #{tpu_custom_call.1} parent=104 // pred_fallthru
                _
            $region105: #{tpu_custom_call.1} parent=100 // pred_fallthru
              _
            // Predicated region
            $region106: #{tpu_custom_call.1} parent=100 // pred_check
              _
            $region107: #{tpu_custom_call.1} parent=100 // pred_check_branch
              %506 = sbr.rel (0) target = $region109
            $region108: #{tpu_custom_call.1} parent=100 // pred_region
              loop: start=0, step=1, limit=1
              $region110: #{tpu_custom_call.1} parent=108 // loop_pre_header
                _
              $region111: #{tpu_custom_call.1} parent=108 // loop_header
                %s509 = sphi 0, %s513
                %p510 = scmp.ge.s32.totalorder %s509, 1
                %s514 = sphi %s500, %s500
                %s515 = sphi %s498, %s498
              $region112: #{tpu_custom_call.1} parent=108 // loop_header_branch
                %512 = sbr.rel (%p510) target = $region116
              $region113: #{tpu_custom_call.1} parent=108 // loop_body
                %v516 = vld [vmem:[%s514] sm:$0xf]
                %517 = vst [vmem:[%s515] sm:$0xf] %v516
                %v518 = vld [vmem:[%s514 + $0x8] sm:$0xf]
                %519 = vst [vmem:[%s515 + $0x4] sm:$0xf] %v518
                %v520 = vld [vmem:[%s514 + $0x10] sm:$0xf]
                %521 = vst [vmem:[%s515 + $0x8] sm:$0xf] %v520
                %v522 = vld [vmem:[%s514 + $0x18] sm:$0xf]
                %523 = vst [vmem:[%s515 + $0xc] sm:$0xf] %v522
                %v524 = vld [vmem:[%s514 + $0x20] sm:$0xf]
                %525 = vst [vmem:[%s515 + $0x10] sm:$0xf] %v524
                %v526 = vld [vmem:[%s514 + $0x28] sm:$0xf]
                %527 = vst [vmem:[%s515 + $0x14] sm:$0xf] %v526
                %v528 = vld [vmem:[%s514 + $0x30] sm:$0xf]
                %529 = vst [vmem:[%s515 + $0x18] sm:$0xf] %v528
                %v530 = vld [vmem:[%s514 + $0x38] sm:$0xf]
                %531 = vst [vmem:[%s515 + $0x1c] sm:$0xf] %v530
              $region114: #{tpu_custom_call.1} parent=108 // loop_footer
                %s513 = sadd.s32 1, %s509
              $region115: #{tpu_custom_call.1} parent=108 // loop_footer_branch
                %508 = sbr.rel target = $region111
              $region116: #{tpu_custom_call.1} parent=108 // loop_exit
                _
            $region109: #{tpu_custom_call.1} parent=100 // pred_fallthru
              _
          $region101: #{tpu_custom_call.1} parent=96 // pred_fallthru
            _
          %567 = vnop
        $region97: #{tpu_custom_call.1} parent=47 // pred_fallthru
          _
        // Predicated region
        $region135: #{tpu_custom_call.1} parent=47 // pred_check
          %p568 = pneg %p303
        $region136: #{tpu_custom_call.1} parent=47 // pred_check_branch
          %570 = sbr.rel (%p568) target = $region138
        $region137: #{tpu_custom_call.1} parent=47 // pred_region
          %s571 = smul.u32 16, %s33
          %p572 = scmp.lt.s32.totalorder %s571, 31
          %s573 = scalar_select %p572, %s571, 31
          %s574 = smul.addr %s573, 4
          %s575 = scalar_lea.vmem %s11, %s574
          %s576 = smul.u32 16, %s33
        $region138: #{tpu_custom_call.1} parent=47 // pred_fallthru
          _
      $region48: #{tpu_custom_call.1} parent=5 // pred_fallthru
        _
      %p577 = scmp.le.s32.totalorder 1, %s25
      %p578 = scmp.lt.s32.totalorder %s25, 5
      %p579 = pnand %p577, %p578
      %p580 = pneg %p579
      // Predicated region
      $region139: #{tpu_custom_call.1} parent=5 // pred_check
        _
      $region140: #{tpu_custom_call.1} parent=5 // pred_check_branch
        %582 = sbr.rel (%p579) target = $region142
      $region141: #{tpu_custom_call.1} parent=5 // pred_region
        %s583 = ssub.s32 %s25, 1
        %s584 = sand.u32 %s50, 1
        %s585 = scalar_lea.sflag [#allocation4], %s584
        %s586 = sand.u32 %s50, 1
        %s587 = smul.addr %s586, 8
        %s588 = scalar_lea.vmem [#allocation3], %s587
        // Predicated region
        $region143: #{tpu_custom_call.1} parent=141 // pred_check
          %p589 = pneg %p63
        $region144: #{tpu_custom_call.1} parent=141 // pred_check_branch
          %591 = sbr.rel (%p589) target = $region146
        $region145: #{tpu_custom_call.1} parent=141 // pred_region
          %592 = dma.done %s585, 128
        $region146: #{tpu_custom_call.1} parent=141 // pred_fallthru
          _
        // Predicated region
        $region147: #{tpu_custom_call.1} parent=141 // pred_check
          %p593 = pneg %p168
        $region148: #{tpu_custom_call.1} parent=141 // pred_check_branch
          %595 = sbr.rel (%p593) target = $region150
        $region149: #{tpu_custom_call.1} parent=141 // pred_region
          %596 = dma.done [#allocation7], 512
        $region150: #{tpu_custom_call.1} parent=141 // pred_fallthru
          _
        // Predicated region
        $region151: #{tpu_custom_call.1} parent=141 // pred_check
          %p597 = pneg %p189
        $region152: #{tpu_custom_call.1} parent=141 // pred_check_branch
          %599 = sbr.rel (%p597) target = $region154
        $region153: #{tpu_custom_call.1} parent=141 // pred_region
          %600 = dma.done [#allocation7], 512
        $region154: #{tpu_custom_call.1} parent=141 // pred_fallthru
          _
        %s601 = sand.u32 %s244, 1
        %s602 = sand.u32 %s244, 1
        %s603 = smul.addr %s602, 32
        %s604 = scalar_lea.vmem [#allocation9], %s603
        // Predicated region
        $region155: #{tpu_custom_call.1} parent=141 // pred_check
          %p605 = pneg %p257
        $region156: #{tpu_custom_call.1} parent=141 // pred_check_branch
          %607 = sbr.rel (%p605) target = $region158
        $region157: #{tpu_custom_call.1} parent=141 // pred_region
          _
        $region158: #{tpu_custom_call.1} parent=141 // pred_fallthru
          _
        %s608 = sand.u32 %s270, 1
        %s609 = sand.u32 %s270, 1
        %s610 = smul.addr %s609, 32
        %s611 = scalar_lea.vmem [#allocation10], %s610
        // Predicated region
        $region159: #{tpu_custom_call.1} parent=141 // pred_check
          %p612 = pneg %p283
        $region160: #{tpu_custom_call.1} parent=141 // pred_check_branch
          %614 = sbr.rel (%p612) target = $region162
        $region161: #{tpu_custom_call.1} parent=141 // pred_region
          _
        $region162: #{tpu_custom_call.1} parent=141 // pred_fallthru
          _
        %s615 = sand.u32 %s50, 1
        %s616 = scalar_lea.sflag [#allocation4], %s615
        %s617 = sand.u32 %s50, 1
        %s618 = smul.addr %s617, 8
        %s619 = scalar_lea.vmem [#allocation3], %s618
        %p620 = pneg %p63
        %p621 = pneg %p60
        %p622 = pneg %p84
        %p623 = pneg %p81
        %p624 = pneg %p105
        %p625 = pneg %p102
        %p626 = pneg %p126
        %p627 = pneg %p123
        %p628 = pneg %p147
        %p629 = pneg %p144
        %p630 = pneg %p168
        %p631 = pneg %p165
        %p632 = pneg %p189
        %p633 = pneg %p186
        %p634 = pneg %p210
        %p635 = pneg %p207
        %p636 = pneg %p231
        %p637 = pneg %p228
        %s638 = sand.u32 %s244, 1
        %s639 = sand.u32 %s244, 1
        %s640 = smul.addr %s639, 32
        %s641 = scalar_lea.vmem [#allocation9], %s640
        %p642 = pneg %p257
        %p643 = pneg %p254
        %s644 = sand.u32 %s270, 1
        %s645 = sand.u32 %s270, 1
        %s646 = smul.addr %s645, 32
        %s647 = scalar_lea.vmem [#allocation10], %s646
        %p648 = pneg %p283
        %p649 = pneg %p280
        %s650 = smul.u32 16, %s35
        %p651 = scmp.lt.s32.totalorder %s650, 31
        %s652 = scalar_select %p651, %s650, 31
        %s653 = smul.addr %s652, 4
        %s654 = scalar_lea.vmem %s11, %s653
        %p655 = pneg %p309
        %p656 = pneg %p306
        %p657 = pneg %p335
        %p658 = pneg %p332
        %s659 = sand.u32 %s322, 1
        %s660 = scalar_lea.sflag [#allocation5], %s659
        %s661 = sand.u32 %s322, 1
        %s662 = smul.addr %s661, 8
        %s663 = scalar_lea.vmem [#allocation11], %s662
        %s664 = smul.u32 16, %s35
        %p665 = scmp.lt.s32.totalorder %s664, 31
        %s666 = scalar_select %p665, %s664, 31
        %s667 = smul.addr %s666, 4
        %s668 = scalar_lea.vmem %s11, %s667
        %s669 = smul.u32 16, %s35
        %p671 = scmp.eq.s32.totalorder %s35, 0
        // Predicated region
        $region163: #{tpu_custom_call.1} parent=141 // pred_check
          %p672 = pneg %p671
        $region164: #{tpu_custom_call.1} parent=141 // pred_check_branch
          %674 = sbr.rel (%p672) target = $region166
        $region165: #{tpu_custom_call.1} parent=141 // pred_region
          %v675 = vld [vmem:[%s588] sm:$0xff]
          %v676 = vld [vmem:[%s1] sm:$0x1]
          %v677 = vld [vmem:[%s2] sm:$0x1]
          %v678 = vld [vmem:[%s7] sm:$0xff]
          %v679 = vld [vmem:[%s8] sm:$0xff]
          %v680 = vmul.f32 %v675, %v675
          %vm681 = vcmask 523264
          %v682 = vsel %vm681, %v680, 0.0
          %683 = vadd.xlane.f32.xlu0 %v682
          %v684 = vpop.xlane.xlu0 %683
          %v685 = vrcp.pop 64.0
          %v686 = vmul.f32 %v684, %v685
          %v687 = vadd.f32 %v686, 1.1920929e-07
          %v688 = vrsqrt.pop %v687
          %v689 = vmul.f32 %v675, %v688
          %v691 = vlaneseq
          %v692 = vshrl.u32 %v691, 7
          %v693 = vsub.s32 0, %v692
          %v694 = vrot.slane %v676, %v693
          %v696 = vmul.f32 %v689, %v694
          %v697 = vpack.c.bf16 %v696, %v696
          %v698 = vld [vmem:[%s3] sm:$0xf]
          %v699 = vld [vmem:[%s3 + $0x4] sm:$0xf]
          %v700 = vld [vmem:[%s3 + $0x8] sm:$0xf]
          %v701 = vld [vmem:[%s3 + $0xc] sm:$0xf]
          %v702 = vld [vmem:[%s3 + $0x10] sm:$0xf]
          %v703 = vld [vmem:[%s3 + $0x14] sm:$0xf]
          %v704 = vld [vmem:[%s3 + $0x18] sm:$0xf]
          %v705 = vld [vmem:[%s3 + $0x1c] sm:$0xf]
          %v714 = vunpack.c.l.b16 %v698
          %v715 = vunpack.c.l.b16 %v699
          %v716 = vunpack.c.l.b16 %v700
          %v717 = vunpack.c.l.b16 %v701
          %v718 = vunpack.c.l.b16 %v702
          %v719 = vunpack.c.l.b16 %v703
          %v720 = vunpack.c.l.b16 %v704
          %v721 = vunpack.c.l.b16 %v705
          %v722 = vpack.c.b16 %v715, %v714
          %v723 = vpack.c.b16 %v717, %v716
          %v724 = vpack.c.b16 %v719, %v718
          %v725 = vpack.c.b16 %v721, %v720
          %v731 = vsel %vm681, %v697, 0
          %733 = vmatprep.subr.bf16.mxu0 0
          %734 = vmatpush1.bf16.msra.mxu0 %v722
          %735 = vmatprep.subr.bf16.mxu0 0
          %736 = vmatpush1.bf16.msra.mxu0 %v723
          %737 = vmatprep.subr.bf16.mxu0 0
          %738 = vmatpush1.bf16.msra.mxu0 %v724
          %739 = vmatprep.subr.bf16.mxu0 0
          %740 = vmatpush1.bf16.msra.mxu0 %v725
          %741 = vmatprep.subr.bf16.mxu0 0
          %742 = vmatpush1.bf16.msra.mxu0 0
          %743 = vmatprep.subr.bf16.mxu0 0
          %744 = vmatpush1.bf16.msra.mxu0 0
          %745 = vmatprep.subr.bf16.mxu0 0
          %746 = vmatpush1.bf16.msra.mxu0 0
          %747 = vmatprep.subr.bf16.mxu0 0
          %748 = vmatpush1.bf16.msra.mxu0 0
          %749 = vmatprep.subr.bf16.mxu0 0
          %750 = vmatpush1.bf16.msra.mxu0 0
          %751 = vmatprep.subr.bf16.mxu0 0
          %752 = vmatpush1.bf16.msra.mxu0 0
          %753 = vmatprep.subr.bf16.mxu0 0
          %754 = vmatpush1.bf16.msra.mxu0 0
          %755 = vmatprep.subr.bf16.mxu0 0
          %756 = vmatpush1.bf16.msra.mxu0 0
          %757 = vmatprep.subr.bf16.mxu0 0
          %758 = vmatpush1.bf16.msra.mxu0 0
          %759 = vmatprep.subr.bf16.mxu0 0
          %760 = vmatpush1.bf16.msra.mxu0 0
          %761 = vmatprep.subr.bf16.mxu0 0
          %762 = vmatpush1.bf16.msra.mxu0 0
          %763 = vmatprep.subr.bf16.mxu0 0
          %764 = vmatpush1.bf16.msra.mxu0 0
          %765 = vmatprep.mubr.bf16.mxu0 0
          %766 = vmatmul.mubr.bf16.gmra.mrb[0].mxu0 %v731
          %v767 = vpop.f32.mrb[0].mxu0
          %v768 = vadd.f32 0.0, %v767
          %v769 = vpop.f32.mrb[0].mxu0
          %v770 = vpop.f32.mrb[0].mxu0
          %v771 = vpop.f32.mrb[0].mxu0
          %772 = vdwg.mxu0
          %v773 = vld [vmem:[%s4] sm:$0xf]
          %v774 = vld [vmem:[%s4 + $0x4] sm:$0xf]
          %v775 = vld [vmem:[%s4 + $0x8] sm:$0xf]
          %v776 = vld [vmem:[%s4 + $0xc] sm:$0xf]
          %v777 = vld [vmem:[%s4 + $0x10] sm:$0xf]
          %v778 = vld [vmem:[%s4 + $0x14] sm:$0xf]
          %v779 = vld [vmem:[%s4 + $0x18] sm:$0xf]
          %v780 = vld [vmem:[%s4 + $0x1c] sm:$0xf]
          %v789 = vunpack.c.l.b16 %v773
          %v790 = vunpack.c.l.b16 %v774
          %v791 = vunpack.c.l.b16 %v775
          %v792 = vunpack.c.l.b16 %v776
          %v793 = vunpack.c.l.b16 %v777
          %v794 = vunpack.c.l.b16 %v778
          %v795 = vunpack.c.l.b16 %v779
          %v796 = vunpack.c.l.b16 %v780
          %v797 = vpack.c.b16 %v790, %v789
          %v798 = vpack.c.b16 %v792, %v791
          %v799 = vpack.c.b16 %v794, %v793
          %v800 = vpack.c.b16 %v796, %v795
          %805 = vmatprep.subr.bf16.mxu0 0
          %806 = vmatpush1.bf16.msra.mxu0 %v797
          %807 = vmatprep.subr.bf16.mxu0 0
          %808 = vmatpush1.bf16.msra.mxu0 %v798
          %809 = vmatprep.subr.bf16.mxu0 0
          %810 = vmatpush1.bf16.msra.mxu0 %v799
          %811 = vmatprep.subr.bf16.mxu0 0
          %812 = vmatpush1.bf16.msra.mxu0 %v800
          %813 = vmatprep.subr.bf16.mxu0 0
          %814 = vmatpush1.bf16.msra.mxu0 0
          %815 = vmatprep.subr.bf16.mxu0 0
          %816 = vmatpush1.bf16.msra.mxu0 0
          %817 = vmatprep.subr.bf16.mxu0 0
          %818 = vmatpush1.bf16.msra.mxu0 0
          %819 = vmatprep.subr.bf16.mxu0 0
          %820 = vmatpush1.bf16.msra.mxu0 0
          %821 = vmatprep.subr.bf16.mxu0 0
          %822 = vmatpush1.bf16.msra.mxu0 0
          %823 = vmatprep.subr.bf16.mxu0 0
          %824 = vmatpush1.bf16.msra.mxu0 0
          %825 = vmatprep.subr.bf16.mxu0 0
          %826 = vmatpush1.bf16.msra.mxu0 0
          %827 = vmatprep.subr.bf16.mxu0 0
          %828 = vmatpush1.bf16.msra.mxu0 0
          %829 = vmatprep.subr.bf16.mxu0 0
          %830 = vmatpush1.bf16.msra.mxu0 0
          %831 = vmatprep.subr.bf16.mxu0 0
          %832 = vmatpush1.bf16.msra.mxu0 0
          %833 = vmatprep.subr.bf16.mxu0 0
          %834 = vmatpush1.bf16.msra.mxu0 0
          %835 = vmatprep.subr.bf16.mxu0 0
          %836 = vmatpush1.bf16.msra.mxu0 0
          %837 = vmatprep.mubr.bf16.mxu0 0
          %838 = vmatmul.mubr.bf16.gmra.mrb[0].mxu0 %v731
          %v839 = vpop.f32.mrb[0].mxu0
          %v840 = vadd.f32 0.0, %v839
          %v841 = vpop.f32.mrb[0].mxu0
          %v842 = vpop.f32.mrb[0].mxu0
          %v843 = vpop.f32.mrb[0].mxu0
          %844 = vdwg.mxu0
          %v845 = vld [vmem:[#allocation6] sm:$0xf]
          %v846 = vld [vmem:[#allocation6 + $0x4] sm:$0xf]
          %v847 = vld [vmem:[#allocation6 + $0x8] sm:$0xf]
          %v848 = vld [vmem:[#allocation6 + $0xc] sm:$0xf]
          %v849 = vld [vmem:[#allocation6 + $0x10] sm:$0xf]
          %v850 = vld [vmem:[#allocation6 + $0x14] sm:$0xf]
          %v851 = vld [vmem:[#allocation6 + $0x18] sm:$0xf]
          %v852 = vld [vmem:[#allocation6 + $0x1c] sm:$0xf]
          %v861 = vunpack.c.l.b16 %v845
          %v862 = vunpack.c.l.b16 %v846
          %v863 = vunpack.c.l.b16 %v847
          %v864 = vunpack.c.l.b16 %v848
          %v865 = vunpack.c.l.b16 %v849
          %v866 = vunpack.c.l.b16 %v850
          %v867 = vunpack.c.l.b16 %v851
          %v868 = vunpack.c.l.b16 %v852
          %v869 = vpack.c.b16 %v862, %v861
          %v870 = vpack.c.b16 %v864, %v863
          %v871 = vpack.c.b16 %v866, %v865
          %v872 = vpack.c.b16 %v868, %v867
          %877 = vmatprep.subr.bf16.mxu0 0
          %878 = vmatpush1.bf16.msra.mxu0 %v869
          %879 = vmatprep.subr.bf16.mxu0 0
          %880 = vmatpush1.bf16.msra.mxu0 %v870
          %881 = vmatprep.subr.bf16.mxu0 0
          %882 = vmatpush1.bf16.msra.mxu0 %v871
          %883 = vmatprep.subr.bf16.mxu0 0
          %884 = vmatpush1.bf16.msra.mxu0 %v872
          %885 = vmatprep.subr.bf16.mxu0 0
          %886 = vmatpush1.bf16.msra.mxu0 0
          %887 = vmatprep.subr.bf16.mxu0 0
          %888 = vmatpush1.bf16.msra.mxu0 0
          %889 = vmatprep.subr.bf16.mxu0 0
          %890 = vmatpush1.bf16.msra.mxu0 0
          %891 = vmatprep.subr.bf16.mxu0 0
          %892 = vmatpush1.bf16.msra.mxu0 0
          %893 = vmatprep.subr.bf16.mxu0 0
          %894 = vmatpush1.bf16.msra.mxu0 0
          %895 = vmatprep.subr.bf16.mxu0 0
          %896 = vmatpush1.bf16.msra.mxu0 0
          %897 = vmatprep.subr.bf16.mxu0 0
          %898 = vmatpush1.bf16.msra.mxu0 0
          %899 = vmatprep.subr.bf16.mxu0 0
          %900 = vmatpush1.bf16.msra.mxu0 0
          %901 = vmatprep.subr.bf16.mxu0 0
          %902 = vmatpush1.bf16.msra.mxu0 0
          %903 = vmatprep.subr.bf16.mxu0 0
          %904 = vmatpush1.bf16.msra.mxu0 0
          %905 = vmatprep.subr.bf16.mxu0 0
          %906 = vmatpush1.bf16.msra.mxu0 0
          %907 = vmatprep.subr.bf16.mxu0 0
          %908 = vmatpush1.bf16.msra.mxu0 0
          %909 = vmatprep.mubr.bf16.mxu0 0
          %910 = vmatmul.mubr.bf16.gmra.mrb[0].mxu0 %v731
          %v911 = vpop.f32.mrb[0].mxu0
          %v912 = vadd.f32 0.0, %v911
          %v913 = vpop.f32.mrb[0].mxu0
          %v914 = vpop.f32.mrb[0].mxu0
          %v915 = vpop.f32.mrb[0].mxu0
          %916 = vdwg.mxu0
          %v917 = vlaneseq
          %v918 = vshrl.u32 %v917, 7
          %v919 = vlaneseq
          %v920 = vand.u32 %v919, 127
          %vm921 = vcmp.le.s32.totalorder %v920, %v918
          %v922 = vsel %vm921, 0.0, -1e+09
          %v923 = vsub.f32 0.0, %v768
          %925 = vrot.lane.b32.xlu0 %v923, 120
          %v926 = vpop.permute.xlu0 %925
          %929 = vrot.lane.b32.xlu0 %v768, 8
          %v930 = vpop.permute.xlu0 %929
          %vm932 = vcmask 64512
          %v933 = vsel %vm932, %v926, %v930
          %v934 = vmul.f32 %v768, %v678
          %v935 = vmul.f32 %v933, %v679
          %v936 = vadd.f32 %v934, %v935
          %v937 = vpack.c.bf16 %v936, %v936
          %v938 = vsub.f32 0.0, %v840
          %940 = vrot.lane.b32.xlu0 %v938, 120
          %v941 = vpop.permute.xlu0 %940
          %944 = vrot.lane.b32.xlu0 %v840, 8
          %v945 = vpop.permute.xlu0 %944
          %v947 = vsel %vm932, %v941, %v945
          %v948 = vmul.f32 %v840, %v678
          %v949 = vmul.f32 %v947, %v679
          %v950 = vadd.f32 %v948, %v949
          %v951 = vpack.c.bf16 %v950, %v950
          %v952 = vpack.c.bf16 %v912, %v912
          %vm953 = vcmask 130048
          %v955 = vsel %vm953, %v937, 0
          %v958 = vsel %vm953, %v951, 0
          %960 = vmatprep.subr.bf16.mxu0 0
          %961 = vmatpush1.bf16.xpose.msra.mxu0 %v958
          %962 = vmatprep.subr.bf16.mxu0 0
          %963 = vmatpush1.bf16.xpose.msra.mxu0 0
          %964 = vmatprep.subr.bf16.mxu0 0
          %965 = vmatpush1.bf16.xpose.msra.mxu0 0
          %966 = vmatprep.subr.bf16.mxu0 0
          %967 = vmatpush1.bf16.xpose.msra.mxu0 0
          %968 = vmatprep.subr.bf16.mxu0 0
          %969 = vmatpush1.bf16.xpose.msra.mxu0 0
          %970 = vmatprep.subr.bf16.mxu0 0
          %971 = vmatpush1.bf16.xpose.msra.mxu0 0
          %972 = vmatprep.subr.bf16.mxu0 0
          %973 = vmatpush1.bf16.xpose.msra.mxu0 0
          %974 = vmatprep.subr.bf16.mxu0 0
          %975 = vmatpush1.bf16.xpose.msra.mxu0 0
          %976 = vmatprep.subr.bf16.mxu0 0
          %977 = vmatpush1.bf16.xpose.msra.mxu0 0
          %978 = vmatprep.subr.bf16.mxu0 0
          %979 = vmatpush1.bf16.xpose.msra.mxu0 0
          %980 = vmatprep.subr.bf16.mxu0 0
          %981 = vmatpush1.bf16.xpose.msra.mxu0 0
          %982 = vmatprep.subr.bf16.mxu0 0
          %983 = vmatpush1.bf16.xpose.msra.mxu0 0
          %984 = vmatprep.subr.bf16.mxu0 0
          %985 = vmatpush1.bf16.xpose.msra.mxu0 0
          %986 = vmatprep.subr.bf16.mxu0 0
          %987 = vmatpush1.bf16.xpose.msra.mxu0 0
          %988 = vmatprep.subr.bf16.mxu0 0
          %989 = vmatpush1.bf16.xpose.msra.mxu0 0
          %990 = vmatprep.subr.bf16.mxu0 0
          %991 = vmatpush1.bf16.xpose.msra.mxu0 0
          %992 = vmatprep.mubr.bf16.mxu0 0
          %993 = vmatmul.mubr.bf16.gmra.mrb[0].mxu0 %v955
          %v994 = vpop.f32.mrb[0].mxu0
          %v995 = vadd.f32 0.0, %v994
          %v996 = vpop.f32.mrb[0].mxu0
          %v997 = vpop.f32.mrb[0].mxu0
          %v998 = vpop.f32.mrb[0].mxu0
          %999 = vdwg.mxu0
          %v1000 = vmul.f32 %v995, 0.25
          %v1001 = vadd.f32 %v1000, %v922
          %v1002 = vsel %vm932, %v1001, -inf
          %1003 = vmax.xlane.f32.xlu0 %v1002
          %v1004 = vpop.xlane.xlu0 %1003
          %v1005 = vsub.f32 %v1001, %v1004
          %v1006 = vmul.f32 %v1005, 1.442695
          %v1007 = vpow.pop %v1006
          %v1008 = vsel %vm932, %v1007, 0.0
          %1009 = vadd.xlane.f32.xlu0 %v1008
          %v1010 = vpop.xlane.xlu0 %1009
          %v1011 = vrcp.pop %v1010
          %v1012 = vmul.f32 %v1007, %v1011
          %v1013 = vpack.c.bf16 %v1012, %v1012
          %v1015 = vsel %vm932, %v1013, 0
          %vm1017 = vcmask 1043456
          %v1019 = vsel %vm1017, %v952, 0
          %1021 = vmatprep.subr.bf16.mxu0 0
          %1022 = vmatpush1.bf16.msra.mxu0 %v1019
          %1023 = vmatprep.subr.bf16.mxu0 0
          %1024 = vmatpush1.bf16.msra.mxu0 0
          %1025 = vmatprep.subr.bf16.mxu0 0
          %1026 = vmatpush1.bf16.msra.mxu0 0
          %1027 = vmatprep.subr.bf16.mxu0 0
          %1028 = vmatpush1.bf16.msra.mxu0 0
          %1029 = vmatprep.subr.bf16.mxu0 0
          %1030 = vmatpush1.bf16.msra.mxu0 0
          %1031 = vmatprep.subr.bf16.mxu0 0
          %1032 = vmatpush1.bf16.msra.mxu0 0
          %1033 = vmatprep.subr.bf16.mxu0 0
          %1034 = vmatpush1.bf16.msra.mxu0 0
          %1035 = vmatprep.subr.bf16.mxu0 0
          %1036 = vmatpush1.bf16.msra.mxu0 0
          %1037 = vmatprep.subr.bf16.mxu0 0
          %1038 = vmatpush1.bf16.msra.mxu0 0
          %1039 = vmatprep.subr.bf16.mxu0 0
          %1040 = vmatpush1.bf16.msra.mxu0 0
          %1041 = vmatprep.subr.bf16.mxu0 0
          %1042 = vmatpush1.bf16.msra.mxu0 0
          %1043 = vmatprep.subr.bf16.mxu0 0
          %1044 = vmatpush1.bf16.msra.mxu0 0
          %1045 = vmatprep.subr.bf16.mxu0 0
          %1046 = vmatpush1.bf16.msra.mxu0 0
          %1047 = vmatprep.subr.bf16.mxu0 0
          %1048 = vmatpush1.bf16.msra.mxu0 0
          %1049 = vmatprep.subr.bf16.mxu0 0
          %1050 = vmatpush1.bf16.msra.mxu0 0
          %1051 = vmatprep.subr.bf16.mxu0 0
          %1052 = vmatpush1.bf16.msra.mxu0 0
          %1053 = vmatprep.mubr.bf16.mxu0 0
          %1054 = vmatmul.mubr.bf16.gmra.mrb[0].mxu0 %v1015
          %v1055 = vpop.f32.mrb[0].mxu0
          %v1056 = vadd.f32 0.0, %v1055
          %v1057 = vpop.f32.mrb[0].mxu0
          %v1058 = vpop.f32.mrb[0].mxu0
          %v1059 = vpop.f32.mrb[0].mxu0
          %1060 = vdwg.mxu0
          %1061 = vrot.lane.b32.xlu0 %v923, 104
          %v1062 = vpop.permute.xlu0 %1061
          %1064 = vrot.lane.b32.xlu0 %v768, 120
          %v1065 = vpop.permute.xlu0 %1064
          %v1067 = vsel %vm932, %v1062, %v1065
          %1069 = vrot.lane.b32.xlu0 %v678, 16
          %v1070 = vpop.permute.xlu0 %1069
          %v1072 = vmul.f32 %v768, %v1070
          %v1073 = vmul.f32 %v1067, %v679
          %1075 = vrot.lane.b32.xlu0 %v1073, 16
          %v1076 = vpop.permute.xlu0 %1075
          %v1078 = vadd.f32 %v1072, %v1076
          %v1079 = vpack.c.bf16 %v1078, %v1078
          %1080 = vrot.lane.b32.xlu0 %v938, 104
          %v1081 = vpop.permute.xlu0 %1080
          %1083 = vrot.lane.b32.xlu0 %v840, 120
          %v1084 = vpop.permute.xlu0 %1083
          %v1086 = vsel %vm932, %v1081, %v1084
          %v1087 = vmul.f32 %v840, %v1070
          %v1088 = vmul.f32 %v1086, %v679
          %1090 = vrot.lane.b32.xlu0 %v1088, 16
          %v1091 = vpop.permute.xlu0 %1090
          %v1093 = vadd.f32 %v1087, %v1091
          %v1094 = vpack.c.bf16 %v1093, %v1093
          %1096 = vrot.lane.b32.xlu0 %v1079, 112
          %v1097 = vpop.permute.xlu0 %1096
          %1099 = vrot.lane.b32.xlu0 %v1094, 112
          %v1100 = vpop.permute.xlu0 %1099
          %v1102 = vsel %vm953, %v1097, 0
          %v1105 = vsel %vm953, %v1100, 0
          %1107 = vmatprep.subr.bf16.mxu0 0
          %1108 = vmatpush1.bf16.xpose.msra.mxu0 %v1105
          %1109 = vmatprep.subr.bf16.mxu0 0
          %1110 = vmatpush1.bf16.xpose.msra.mxu0 0
          %1111 = vmatprep.subr.bf16.mxu0 0
          %1112 = vmatpush1.bf16.xpose.msra.mxu0 0
          %1113 = vmatprep.subr.bf16.mxu0 0
          %1114 = vmatpush1.bf16.xpose.msra.mxu0 0
          %1115 = vmatprep.subr.bf16.mxu0 0
          %1116 = vmatpush1.bf16.xpose.msra.mxu0 0
          %1117 = vmatprep.subr.bf16.mxu0 0
          %1118 = vmatpush1.bf16.xpose.msra.mxu0 0
          %1119 = vmatprep.subr.bf16.mxu0 0
          %1120 = vmatpush1.bf16.xpose.msra.mxu0 0
          %1121 = vmatprep.subr.bf16.mxu0 0
          %1122 = vmatpush1.bf16.xpose.msra.mxu0 0
          %1123 = vmatprep.subr.bf16.mxu0 0
          %1124 = vmatpush1.bf16.xpose.msra.mxu0 0
          %1125 = vmatprep.subr.bf16.mxu0 0
          %1126 = vmatpush1.bf16.xpose.msra.mxu0 0
          %1127 = vmatprep.subr.bf16.mxu0 0
          %1128 = vmatpush1.bf16.xpose.msra.mxu0 0
          %1129 = vmatprep.subr.bf16.mxu0 0
          %1130 = vmatpush1.bf16.xpose.msra.mxu0 0
          %1131 = vmatprep.subr.bf16.mxu0 0
          %1132 = vmatpush1.bf16.xpose.msra.mxu0 0
          %1133 = vmatprep.subr.bf16.mxu0 0
          %1134 = vmatpush1.bf16.xpose.msra.mxu0 0
          %1135 = vmatprep.subr.bf16.mxu0 0
          %1136 = vmatpush1.bf16.xpose.msra.mxu0 0
          %1137 = vmatprep.subr.bf16.mxu0 0
          %1138 = vmatpush1.bf16.xpose.msra.mxu0 0
          %1139 = vmatprep.mubr.bf16.mxu0 0
          %1140 = vmatmul.mubr.bf16.gmra.mrb[0].mxu0 %v1102
          %v1141 = vpop.f32.mrb[0].mxu0
          %v1142 = vadd.f32 0.0, %v1141
          %v1143 = vpop.f32.mrb[0].mxu0
          %v1144 = vpop.f32.mrb[0].mxu0
          %v1145 = vpop.f32.mrb[0].mxu0
          %1146 = vdwg.mxu0
          %v1147 = vmul.f32 %v1142, 0.25
          %v1148 = vadd.f32 %v1147, %v922
          %v1149 = vsel %vm932, %v1148, -inf
          %1150 = vmax.xlane.f32.xlu0 %v1149
          %v1151 = vpop.xlane.xlu0 %1150
          %v1152 = vsub.f32 %v1148, %v1151
          %v1153 = vmul.f32 %v1152, 1.442695
          %v1154 = vpow.pop %v1153
          %v1155 = vsel %vm932, %v1154, 0.0
          %1156 = vadd.xlane.f32.xlu0 %v1155
          %v1157 = vpop.xlane.xlu0 %1156
          %v1158 = vrcp.pop %v1157
          %v1159 = vmul.f32 %v1154, %v1158
          %v1160 = vpack.c.bf16 %v1159, %v1159
          %1162 = vrot.lane.b32.xlu0 %v952, 112
          %v1163 = vpop.permute.xlu0 %1162
          %v1165 = vsel %vm932, %v1160, 0
          %v1168 = vsel %vm1017, %v1163, 0
          %1170 = vmatprep.subr.bf16.mxu0 0
          %1171 = vmatpush1.bf16.msra.mxu0 %v1168
          %1172 = vmatprep.subr.bf16.mxu0 0
          %1173 = vmatpush1.bf16.msra.mxu0 0
          %1174 = vmatprep.subr.bf16.mxu0 0
          %1175 = vmatpush1.bf16.msra.mxu0 0
          %1176 = vmatprep.subr.bf16.mxu0 0
          %1177 = vmatpush1.bf16.msra.mxu0 0
          %1178 = vmatprep.subr.bf16.mxu0 0
          %1179 = vmatpush1.bf16.msra.mxu0 0
          %1180 = vmatprep.subr.bf16.mxu0 0
          %1181 = vmatpush1.bf16.msra.mxu0 0
          %1182 = vmatprep.subr.bf16.mxu0 0
          %1183 = vmatpush1.bf16.msra.mxu0 0
          %1184 = vmatprep.subr.bf16.mxu0 0
          %1185 = vmatpush1.bf16.msra.mxu0 0
          %1186 = vmatprep.subr.bf16.mxu0 0
          %1187 = vmatpush1.bf16.msra.mxu0 0
          %1188 = vmatprep.subr.bf16.mxu0 0
          %1189 = vmatpush1.bf16.msra.mxu0 0
          %1190 = vmatprep.subr.bf16.mxu0 0
          %1191 = vmatpush1.bf16.msra.mxu0 0
          %1192 = vmatprep.subr.bf16.mxu0 0
          %1193 = vmatpush1.bf16.msra.mxu0 0
          %1194 = vmatprep.subr.bf16.mxu0 0
          %1195 = vmatpush1.bf16.msra.mxu0 0
          %1196 = vmatprep.subr.bf16.mxu0 0
          %1197 = vmatpush1.bf16.msra.mxu0 0
          %1198 = vmatprep.subr.bf16.mxu0 0
          %1199 = vmatpush1.bf16.msra.mxu0 0
          %1200 = vmatprep.subr.bf16.mxu0 0
          %1201 = vmatpush1.bf16.msra.mxu0 0
          %1202 = vmatprep.mubr.bf16.mxu0 0
          %1203 = vmatmul.mubr.bf16.gmra.mrb[0].mxu0 %v1165
          %v1204 = vpop.f32.mrb[0].mxu0
          %v1205 = vadd.f32 0.0, %v1204
          %v1206 = vpop.f32.mrb[0].mxu0
          %v1207 = vpop.f32.mrb[0].mxu0
          %v1208 = vpop.f32.mrb[0].mxu0
          %1209 = vdwg.mxu0
          %1210 = vrot.lane.b32.xlu0 %v923, 88
          %v1211 = vpop.permute.xlu0 %1210
          %1213 = vrot.lane.b32.xlu0 %v768, 104
          %v1214 = vpop.permute.xlu0 %1213
          %v1216 = vsel %vm932, %v1211, %v1214
          %1217 = vrot.lane.b32.xlu0 %v678, 32
          %v1218 = vpop.permute.xlu0 %1217
          %v1220 = vmul.f32 %v768, %v1218
          %v1221 = vmul.f32 %v1216, %v679
          %1223 = vrot.lane.b32.xlu0 %v1221, 32
          %v1224 = vpop.permute.xlu0 %1223
          %v1226 = vadd.f32 %v1220, %v1224
          %v1227 = vpack.c.bf16 %v1226, %v1226
          %1228 = vrot.lane.b32.xlu0 %v938, 88
          %v1229 = vpop.permute.xlu0 %1228
          %1231 = vrot.lane.b32.xlu0 %v840, 104
          %v1232 = vpop.permute.xlu0 %1231
          %v1234 = vsel %vm932, %v1229, %v1232
          %v1235 = vmul.f32 %v840, %v1218
          %v1236 = vmul.f32 %v1234, %v679
          %1238 = vrot.lane.b32.xlu0 %v1236, 32
          %v1239 = vpop.permute.xlu0 %1238
          %v1241 = vadd.f32 %v1235, %v1239
          %v1242 = vpack.c.bf16 %v1241, %v1241
          %1244 = vrot.lane.b32.xlu0 %v1227, 96
          %v1245 = vpop.permute.xlu0 %1244
          %1247 = vrot.lane.b32.xlu0 %v1242, 96
          %v1248 = vpop.permute.xlu0 %1247
          %v1250 = vsel %vm953, %v1245, 0
          %v1253 = vsel %vm953, %v1248, 0
          %1255 = vmatprep.subr.bf16.mxu0 0
          %1256 = vmatpush1.bf16.xpose.msra.mxu0 %v1253
          %1257 = vmatprep.subr.bf16.mxu0 0
          %1258 = vmatpush1.bf16.xpose.msra.mxu0 0
          %1259 = vmatprep.subr.bf16.mxu0 0
          %1260 = vmatpush1.bf16.xpose.msra.mxu0 0
          %1261 = vmatprep.subr.bf16.mxu0 0
          %1262 = vmatpush1.bf16.xpose.msra.mxu0 0
          %1263 = vmatprep.subr.bf16.mxu0 0
          %1264 = vmatpush1.bf16.xpose.msra.mxu0 0
          %1265 = vmatprep.subr.bf16.mxu0 0
          %1266 = vmatpush1.bf16.xpose.msra.mxu0 0
          %1267 = vmatprep.subr.bf16.mxu0 0
          %1268 = vmatpush1.bf16.xpose.msra.mxu0 0
          %1269 = vmatprep.subr.bf16.mxu0 0
          %1270 = vmatpush1.bf16.xpose.msra.mxu0 0
          %1271 = vmatprep.subr.bf16.mxu0 0
          %1272 = vmatpush1.bf16.xpose.msra.mxu0 0
          %1273 = vmatprep.subr.bf16.mxu0 0
          %1274 = vmatpush1.bf16.xpose.msra.mxu0 0
          %1275 = vmatprep.subr.bf16.mxu0 0
          %1276 = vmatpush1.bf16.xpose.msra.mxu0 0
          %1277 = vmatprep.subr.bf16.mxu0 0
          %1278 = vmatpush1.bf16.xpose.msra.mxu0 0
          %1279 = vmatprep.subr.bf16.mxu0 0
          %1280 = vmatpush1.bf16.xpose.msra.mxu0 0
          %1281 = vmatprep.subr.bf16.mxu0 0
          %1282 = vmatpush1.bf16.xpose.msra.mxu0 0
          %1283 = vmatprep.subr.bf16.mxu0 0
          %1284 = vmatpush1.bf16.xpose.msra.mxu0 0
          %1285 = vmatprep.subr.bf16.mxu0 0
          %1286 = vmatpush1.bf16.xpose.msra.mxu0 0
          %1287 = vmatprep.mubr.bf16.mxu0 0
          %1288 = vmatmul.mubr.bf16.gmra.mrb[0].mxu0 %v1250
          %v1289 = vpop.f32.mrb[0].mxu0
          %v1290 = vadd.f32 0.0, %v1289
          %v1291 = vpop.f32.mrb[0].mxu0
          %v1292 = vpop.f32.mrb[0].mxu0
          %v1293 = vpop.f32.mrb[0].mxu0
          %1294 = vdwg.mxu0
          %v1295 = vmul.f32 %v1290, 0.25
          %v1296 = vadd.f32 %v1295, %v922
          %v1297 = vsel %vm932, %v1296, -inf
          %1298 = vmax.xlane.f32.xlu0 %v1297
          %v1299 = vpop.xlane.xlu0 %1298
          %v1300 = vsub.f32 %v1296, %v1299
          %v1301 = vmul.f32 %v1300, 1.442695
          %v1302 = vpow.pop %v1301
          %v1303 = vsel %vm932, %v1302, 0.0
          %1304 = vadd.xlane.f32.xlu0 %v1303
          %v1305 = vpop.xlane.xlu0 %1304
          %v1306 = vrcp.pop %v1305
          %v1307 = vmul.f32 %v1302, %v1306
          %v1308 = vpack.c.bf16 %v1307, %v1307
          %1309 = vrot.lane.b32.xlu0 %v952, 96
          %v1310 = vpop.permute.xlu0 %1309
          %v1312 = vsel %vm932, %v1308, 0
          %v1315 = vsel %vm1017, %v1310, 0
          %1317 = vmatprep.subr.bf16.mxu0 0
          %1318 = vmatpush1.bf16.msra.mxu0 %v1315
          %1319 = vmatprep.subr.bf16.mxu0 0
          %1320 = vmatpush1.bf16.msra.mxu0 0
          %1321 = vmatprep.subr.bf16.mxu0 0
          %1322 = vmatpush1.bf16.msra.mxu0 0
          %1323 = vmatprep.subr.bf16.mxu0 0
          %1324 = vmatpush1.bf16.msra.mxu0 0
          %1325 = vmatprep.subr.bf16.mxu0 0
          %1326 = vmatpush1.bf16.msra.mxu0 0
          %1327 = vmatprep.subr.bf16.mxu0 0
          %1328 = vmatpush1.bf16.msra.mxu0 0
          %1329 = vmatprep.subr.bf16.mxu0 0
          %1330 = vmatpush1.bf16.msra.mxu0 0
          %1331 = vmatprep.subr.bf16.mxu0 0
          %1332 = vmatpush1.bf16.msra.mxu0 0
          %1333 = vmatprep.subr.bf16.mxu0 0
          %1334 = vmatpush1.bf16.msra.mxu0 0
          %1335 = vmatprep.subr.bf16.mxu0 0
          %1336 = vmatpush1.bf16.msra.mxu0 0
          %1337 = vmatprep.subr.bf16.mxu0 0
          %1338 = vmatpush1.bf16.msra.mxu0 0
          %1339 = vmatprep.subr.bf16.mxu0 0
          %1340 = vmatpush1.bf16.msra.mxu0 0
          %1341 = vmatprep.subr.bf16.mxu0 0
          %1342 = vmatpush1.bf16.msra.mxu0 0
          %1343 = vmatprep.subr.bf16.mxu0 0
          %1344 = vmatpush1.bf16.msra.mxu0 0
          %1345 = vmatprep.subr.bf16.mxu0 0
          %1346 = vmatpush1.bf16.msra.mxu0 0
          %1347 = vmatprep.subr.bf16.mxu0 0
          %1348 = vmatpush1.bf16.msra.mxu0 0
          %1349 = vmatprep.mubr.bf16.mxu0 0
          %1350 = vmatmul.mubr.bf16.gmra.mrb[0].mxu0 %v1312
          %v1351 = vpop.f32.mrb[0].mxu0
          %v1352 = vadd.f32 0.0, %v1351
          %v1353 = vpop.f32.mrb[0].mxu0
          %v1354 = vpop.f32.mrb[0].mxu0
          %v1355 = vpop.f32.mrb[0].mxu0
          %1356 = vdwg.mxu0
          %1357 = vrot.lane.b32.xlu0 %v923, 72
          %v1358 = vpop.permute.xlu0 %1357
          %1360 = vrot.lane.b32.xlu0 %v768, 88
          %v1361 = vpop.permute.xlu0 %1360
          %v1363 = vsel %vm932, %v1358, %v1361
          %1364 = vrot.lane.b32.xlu0 %v678, 48
          %v1365 = vpop.permute.xlu0 %1364
          %v1367 = vmul.f32 %v768, %v1365
          %v1368 = vmul.f32 %v1363, %v679
          %1370 = vrot.lane.b32.xlu0 %v1368, 48
          %v1371 = vpop.permute.xlu0 %1370
          %v1373 = vadd.f32 %v1367, %v1371
          %v1374 = vpack.c.bf16 %v1373, %v1373
          %1375 = vrot.lane.b32.xlu0 %v938, 72
          %v1376 = vpop.permute.xlu0 %1375
          %1378 = vrot.lane.b32.xlu0 %v840, 88
          %v1379 = vpop.permute.xlu0 %1378
          %v1381 = vsel %vm932, %v1376, %v1379
          %v1382 = vmul.f32 %v840, %v1365
          %v1383 = vmul.f32 %v1381, %v679
          %1385 = vrot.lane.b32.xlu0 %v1383, 48
          %v1386 = vpop.permute.xlu0 %1385
          %v1388 = vadd.f32 %v1382, %v1386
          %v1389 = vpack.c.bf16 %v1388, %v1388
          %1391 = vrot.lane.b32.xlu0 %v1374, 80
          %v1392 = vpop.permute.xlu0 %1391
          %1394 = vrot.lane.b32.xlu0 %v1389, 80
          %v1395 = vpop.permute.xlu0 %1394
          %v1397 = vsel %vm953, %v1392, 0
          %v1400 = vsel %vm953, %v1395, 0
          %1402 = vmatprep.subr.bf16.mxu0 0
          %1403 = vmatpush1.bf16.xpose.msra.mxu0 %v1400
          %1404 = vmatprep.subr.bf16.mxu0 0
          %1405 = vmatpush1.bf16.xpose.msra.mxu0 0
          %1406 = vmatprep.subr.bf16.mxu0 0
          %1407 = vmatpush1.bf16.xpose.msra.mxu0 0
          %1408 = vmatprep.subr.bf16.mxu0 0
          %1409 = vmatpush1.bf16.xpose.msra.mxu0 0
          %1410 = vmatprep.subr.bf16.mxu0 0
          %1411 = vmatpush1.bf16.xpose.msra.mxu0 0
          %1412 = vmatprep.subr.bf16.mxu0 0
          %1413 = vmatpush1.bf16.xpose.msra.mxu0 0
          %1414 = vmatprep.subr.bf16.mxu0 0
          %1415 = vmatpush1.bf16.xpose.msra.mxu0 0
          %1416 = vmatprep.subr.bf16.mxu0 0
          %1417 = vmatpush1.bf16.xpose.msra.mxu0 0
          %1418 = vmatprep.subr.bf16.mxu0 0
          %1419 = vmatpush1.bf16.xpose.msra.mxu0 0
          %1420 = vmatprep.subr.bf16.mxu0 0
          %1421 = vmatpush1.bf16.xpose.msra.mxu0 0
          %1422 = vmatprep.subr.bf16.mxu0 0
          %1423 = vmatpush1.bf16.xpose.msra.mxu0 0
          %1424 = vmatprep.subr.bf16.mxu0 0
          %1425 = vmatpush1.bf16.xpose.msra.mxu0 0
          %1426 = vmatprep.subr.bf16.mxu0 0
          %1427 = vmatpush1.bf16.xpose.msra.mxu0 0
          %1428 = vmatprep.subr.bf16.mxu0 0
          %1429 = vmatpush1.bf16.xpose.msra.mxu0 0
          %1430 = vmatprep.subr.bf16.mxu0 0
          %1431 = vmatpush1.bf16.xpose.msra.mxu0 0
          %1432 = vmatprep.subr.bf16.mxu0 0
          %1433 = vmatpush1.bf16.xpose.msra.mxu0 0
          %1434 = vmatprep.mubr.bf16.mxu0 0
          %1435 = vmatmul.mubr.bf16.gmra.mrb[0].mxu0 %v1397
          %v1436 = vpop.f32.mrb[0].mxu0
          %v1437 = vadd.f32 0.0, %v1436
          %v1438 = vpop.f32.mrb[0].mxu0
          %v1439 = vpop.f32.mrb[0].mxu0
          %v1440 = vpop.f32.mrb[0].mxu0
          %1441 = vdwg.mxu0
          %v1442 = vmul.f32 %v1437, 0.25
          %v1443 = vadd.f32 %v1442, %v922
          %v1444 = vsel %vm932, %v1443, -inf
          %1445 = vmax.xlane.f32.xlu0 %v1444
          %v1446 = vpop.xlane.xlu0 %1445
          %v1447 = vsub.f32 %v1443, %v1446
          %v1448 = vmul.f32 %v1447, 1.442695
          %v1449 = vpow.pop %v1448
          %v1450 = vsel %vm932, %v1449, 0.0
          %1451 = vadd.xlane.f32.xlu0 %v1450
          %v1452 = vpop.xlane.xlu0 %1451
          %v1453 = vrcp.pop %v1452
          %v1454 = vmul.f32 %v1449, %v1453
          %v1455 = vpack.c.bf16 %v1454, %v1454
          %1456 = vrot.lane.b32.xlu0 %v952, 80
          %v1457 = vpop.permute.xlu0 %1456
          %v1459 = vsel %vm932, %v1455, 0
          %v1462 = vsel %vm1017, %v1457, 0
          %1464 = vmatprep.subr.bf16.mxu0 0
          %1465 = vmatpush1.bf16.msra.mxu0 %v1462
          %1466 = vmatprep.subr.bf16.mxu0 0
          %1467 = vmatpush1.bf16.msra.mxu0 0
          %1468 = vmatprep.subr.bf16.mxu0 0
          %1469 = vmatpush1.bf16.msra.mxu0 0
          %1470 = vmatprep.subr.bf16.mxu0 0
          %1471 = vmatpush1.bf16.msra.mxu0 0
          %1472 = vmatprep.subr.bf16.mxu0 0
          %1473 = vmatpush1.bf16.msra.mxu0 0
          %1474 = vmatprep.subr.bf16.mxu0 0
          %1475 = vmatpush1.bf16.msra.mxu0 0
          %1476 = vmatprep.subr.bf16.mxu0 0
          %1477 = vmatpush1.bf16.msra.mxu0 0
          %1478 = vmatprep.subr.bf16.mxu0 0
          %1479 = vmatpush1.bf16.msra.mxu0 0
          %1480 = vmatprep.subr.bf16.mxu0 0
          %1481 = vmatpush1.bf16.msra.mxu0 0
          %1482 = vmatprep.subr.bf16.mxu0 0
          %1483 = vmatpush1.bf16.msra.mxu0 0
          %1484 = vmatprep.subr.bf16.mxu0 0
          %1485 = vmatpush1.bf16.msra.mxu0 0
          %1486 = vmatprep.subr.bf16.mxu0 0
          %1487 = vmatpush1.bf16.msra.mxu0 0
          %1488 = vmatprep.subr.bf16.mxu0 0
          %1489 = vmatpush1.bf16.msra.mxu0 0
          %1490 = vmatprep.subr.bf16.mxu0 0
          %1491 = vmatpush1.bf16.msra.mxu0 0
          %1492 = vmatprep.subr.bf16.mxu0 0
          %1493 = vmatpush1.bf16.msra.mxu0 0
          %1494 = vmatprep.subr.bf16.mxu0 0
          %1495 = vmatpush1.bf16.msra.mxu0 0
          %1496 = vmatprep.mubr.bf16.mxu0 0
          %1497 = vmatmul.mubr.bf16.gmra.mrb[0].mxu0 %v1459
          %v1498 = vpop.f32.mrb[0].mxu0
          %v1499 = vadd.f32 0.0, %v1498
          %v1500 = vpop.f32.mrb[0].mxu0
          %v1501 = vpop.f32.mrb[0].mxu0
          %v1502 = vpop.f32.mrb[0].mxu0
          %1503 = vdwg.mxu0
          %1505 = vrot.lane.b32.xlu0 %v1205, 16
          %v1506 = vpop.permute.xlu0 %1505
          %1509 = vrot.lane.b32.xlu0 %v1352, 32
          %v1510 = vpop.permute.xlu0 %1509
          %1513 = vrot.lane.b32.xlu0 %v1499, 48
          %v1514 = vpop.permute.xlu0 %1513
          %v1516 = vsel %vm953, %v1056, %v1506
          %vm1517 = vcmask 261120
          %v1518 = vsel %vm1517, %v1516, %v1510
          %vm1519 = vcmask 392192
          %v1520 = vsel %vm1519, %v1518, %v1514
          %v1521 = vpack.c.bf16 %v1520, %v1520
          %v1522 = vld [vmem:[#allocation8] sm:$0xf]
          %v1523 = vld [vmem:[#allocation8 + $0x4] sm:$0xf]
          %v1524 = vld [vmem:[#allocation8 + $0x8] sm:$0xf]
          %v1525 = vld [vmem:[#allocation8 + $0xc] sm:$0xf]
          %v1526 = vld [vmem:[#allocation8 + $0x10] sm:$0xf]
          %v1527 = vld [vmem:[#allocation8 + $0x14] sm:$0xf]
          %v1528 = vld [vmem:[#allocation8 + $0x18] sm:$0xf]
          %v1529 = vld [vmem:[#allocation8 + $0x1c] sm:$0xf]
          %v1538 = vunpack.c.l.b16 %v1522
          %v1539 = vunpack.c.l.b16 %v1523
          %v1540 = vunpack.c.l.b16 %v1524
          %v1541 = vunpack.c.l.b16 %v1525
          %v1542 = vunpack.c.l.b16 %v1526
          %v1543 = vunpack.c.l.b16 %v1527
          %v1544 = vunpack.c.l.b16 %v1528
          %v1545 = vunpack.c.l.b16 %v1529
          %v1546 = vpack.c.b16 %v1539, %v1538
          %v1547 = vpack.c.b16 %v1541, %v1540
          %v1548 = vpack.c.b16 %v1543, %v1542
          %v1549 = vpack.c.b16 %v1545, %v1544
          %v1555 = vsel %vm681, %v1521, 0
          %1557 = vmatprep.subr.bf16.mxu0 0
          %1558 = vmatpush1.bf16.msra.mxu0 %v1546
          %1559 = vmatprep.subr.bf16.mxu0 0
          %1560 = vmatpush1.bf16.msra.mxu0 %v1547
          %1561 = vmatprep.subr.bf16.mxu0 0
          %1562 = vmatpush1.bf16.msra.mxu0 %v1548
          %1563 = vmatprep.subr.bf16.mxu0 0
          %1564 = vmatpush1.bf16.msra.mxu0 %v1549
          %1565 = vmatprep.subr.bf16.mxu0 0
          %1566 = vmatpush1.bf16.msra.mxu0 0
          %1567 = vmatprep.subr.bf16.mxu0 0
          %1568 = vmatpush1.bf16.msra.mxu0 0
          %1569 = vmatprep.subr.bf16.mxu0 0
          %1570 = vmatpush1.bf16.msra.mxu0 0
          %1571 = vmatprep.subr.bf16.mxu0 0
          %1572 = vmatpush1.bf16.msra.mxu0 0
          %1573 = vmatprep.subr.bf16.mxu0 0
          %1574 = vmatpush1.bf16.msra.mxu0 0
          %1575 = vmatprep.subr.bf16.mxu0 0
          %1576 = vmatpush1.bf16.msra.mxu0 0
          %1577 = vmatprep.subr.bf16.mxu0 0
          %1578 = vmatpush1.bf16.msra.mxu0 0
          %1579 = vmatprep.subr.bf16.mxu0 0
          %1580 = vmatpush1.bf16.msra.mxu0 0
          %1581 = vmatprep.subr.bf16.mxu0 0
          %1582 = vmatpush1.bf16.msra.mxu0 0
          %1583 = vmatprep.subr.bf16.mxu0 0
          %1584 = vmatpush1.bf16.msra.mxu0 0
          %1585 = vmatprep.subr.bf16.mxu0 0
          %1586 = vmatpush1.bf16.msra.mxu0 0
          %1587 = vmatprep.subr.bf16.mxu0 0
          %1588 = vmatpush1.bf16.msra.mxu0 0
          %1589 = vmatprep.mubr.bf16.mxu0 0
          %1590 = vmatmul.mubr.bf16.gmra.mrb[0].mxu0 %v1555
          %v1591 = vpop.f32.mrb[0].mxu0
          %v1592 = vadd.f32 0.0, %v1591
          %v1593 = vpop.f32.mrb[0].mxu0
          %v1594 = vpop.f32.mrb[0].mxu0
          %v1595 = vpop.f32.mrb[0].mxu0
          %1596 = vdwg.mxu0
          %v1597 = vadd.f32 %v696, %v1592
          %1598 = vst.msk [vmem:[%s663] sm:$0xff] %vm681, %v1597
          %v1599 = vmul.f32 %v1597, %v1597
          %v1600 = vsel %vm681, %v1599, 0.0
          %1601 = vadd.xlane.f32.xlu0 %v1600
          %v1602 = vpop.xlane.xlu0 %1601
          %v1603 = vmul.f32 %v1602, %v685
          %v1604 = vadd.f32 %v1603, 1.1920929e-07
          %v1605 = vrsqrt.pop %v1604
          %v1606 = vmul.f32 %v1597, %v1605
          %v1608 = vlaneseq
          %v1609 = vshrl.u32 %v1608, 7
          %v1610 = vsub.s32 0, %v1609
          %v1611 = vrot.slane %v677, %v1610
          %v1613 = vmul.f32 %v1606, %v1611
          %1614 = vst.msk [vmem:[#allocation2] sm:$0xff] %vm681, %v1613
        $region166: #{tpu_custom_call.1} parent=141 // pred_fallthru
          _
        %v1615 = vld [vmem:[#allocation2] sm:$0xff]
        %v1616 = vpack.c.bf16 %v1615, %v1615
        %v1617 = vld [vmem:[%s604] sm:$0xf]
        %v1618 = vld [vmem:[%s604 + $0x4] sm:$0xf]
        %v1619 = vld [vmem:[%s604 + $0x8] sm:$0xf]
        %v1620 = vld [vmem:[%s604 + $0xc] sm:$0xf]
        %v1621 = vld [vmem:[%s604 + $0x10] sm:$0xf]
        %v1622 = vld [vmem:[%s604 + $0x14] sm:$0xf]
        %v1623 = vld [vmem:[%s604 + $0x18] sm:$0xf]
        %v1624 = vld [vmem:[%s604 + $0x1c] sm:$0xf]
        %v1633 = vunpack.c.l.b16 %v1617
        %v1634 = vunpack.c.l.b16 %v1618
        %v1635 = vunpack.c.l.b16 %v1619
        %v1636 = vunpack.c.l.b16 %v1620
        %v1637 = vunpack.c.l.b16 %v1621
        %v1638 = vunpack.c.l.b16 %v1622
        %v1639 = vunpack.c.l.b16 %v1623
        %v1640 = vunpack.c.l.b16 %v1624
        %v1641 = vpack.c.b16 %v1634, %v1633
        %v1642 = vpack.c.b16 %v1636, %v1635
        %v1643 = vpack.c.b16 %v1638, %v1637
        %v1644 = vpack.c.b16 %v1640, %v1639
        %vm1649 = vcmask 523264
        %v1651 = vsel %vm1649, %v1616, 0
        %1653 = vmatprep.subr.bf16.mxu0 0
        %1654 = vmatpush1.bf16.msra.mxu0 %v1641
        %1655 = vmatprep.subr.bf16.mxu0 0
        %1656 = vmatpush1.bf16.msra.mxu0 %v1642
        %1657 = vmatprep.subr.bf16.mxu0 0
        %1658 = vmatpush1.bf16.msra.mxu0 %v1643
        %1659 = vmatprep.subr.bf16.mxu0 0
        %1660 = vmatpush1.bf16.msra.mxu0 %v1644
        %1661 = vmatprep.subr.bf16.mxu0 0
        %1662 = vmatpush1.bf16.msra.mxu0 0
        %1663 = vmatprep.subr.bf16.mxu0 0
        %1664 = vmatpush1.bf16.msra.mxu0 0
        %1665 = vmatprep.subr.bf16.mxu0 0
        %1666 = vmatpush1.bf16.msra.mxu0 0
        %1667 = vmatprep.subr.bf16.mxu0 0
        %1668 = vmatpush1.bf16.msra.mxu0 0
        %1669 = vmatprep.subr.bf16.mxu0 0
        %1670 = vmatpush1.bf16.msra.mxu0 0
        %1671 = vmatprep.subr.bf16.mxu0 0
        %1672 = vmatpush1.bf16.msra.mxu0 0
        %1673 = vmatprep.subr.bf16.mxu0 0
        %1674 = vmatpush1.bf16.msra.mxu0 0
        %1675 = vmatprep.subr.bf16.mxu0 0
        %1676 = vmatpush1.bf16.msra.mxu0 0
        %1677 = vmatprep.subr.bf16.mxu0 0
        %1678 = vmatpush1.bf16.msra.mxu0 0
        %1679 = vmatprep.subr.bf16.mxu0 0
        %1680 = vmatpush1.bf16.msra.mxu0 0
        %1681 = vmatprep.subr.bf16.mxu0 0
        %1682 = vmatpush1.bf16.msra.mxu0 0
        %1683 = vmatprep.subr.bf16.mxu0 0
        %1684 = vmatpush1.bf16.msra.mxu0 0
        %1685 = vmatprep.mubr.bf16.mxu0 0
        %1686 = vmatmul.mubr.bf16.gmra.mrb[0].mxu0 %v1651
        %v1687 = vpop.f32.mrb[0].mxu0
        %v1688 = vadd.f32 0.0, %v1687
        %v1689 = vpop.f32.mrb[0].mxu0
        %v1690 = vpop.f32.mrb[0].mxu0
        %v1691 = vpop.f32.mrb[0].mxu0
        %1692 = vdwg.mxu0
        %v1693 = vld [vmem:[%s611] sm:$0xf]
        %v1694 = vld [vmem:[%s611 + $0x4] sm:$0xf]
        %v1695 = vld [vmem:[%s611 + $0x8] sm:$0xf]
        %v1696 = vld [vmem:[%s611 + $0xc] sm:$0xf]
        %v1697 = vld [vmem:[%s611 + $0x10] sm:$0xf]
        %v1698 = vld [vmem:[%s611 + $0x14] sm:$0xf]
        %v1699 = vld [vmem:[%s611 + $0x18] sm:$0xf]
        %v1700 = vld [vmem:[%s611 + $0x1c] sm:$0xf]
        %v1709 = vunpack.c.l.b16 %v1693
        %v1710 = vunpack.c.l.b16 %v1694
        %v1711 = vunpack.c.l.b16 %v1695
        %v1712 = vunpack.c.l.b16 %v1696
        %v1713 = vunpack.c.l.b16 %v1697
        %v1714 = vunpack.c.l.b16 %v1698
        %v1715 = vunpack.c.l.b16 %v1699
        %v1716 = vunpack.c.l.b16 %v1700
        %v1717 = vpack.c.b16 %v1710, %v1709
        %v1718 = vpack.c.b16 %v1712, %v1711
        %v1719 = vpack.c.b16 %v1714, %v1713
        %v1720 = vpack.c.b16 %v1716, %v1715
        %1725 = vmatprep.subr.bf16.mxu0 0
        %1726 = vmatpush1.bf16.msra.mxu0 %v1717
        %1727 = vmatprep.subr.bf16.mxu0 0
        %1728 = vmatpush1.bf16.msra.mxu0 %v1718
        %1729 = vmatprep.subr.bf16.mxu0 0
        %1730 = vmatpush1.bf16.msra.mxu0 %v1719
        %1731 = vmatprep.subr.bf16.mxu0 0
        %1732 = vmatpush1.bf16.msra.mxu0 %v1720
        %1733 = vmatprep.subr.bf16.mxu0 0
        %1734 = vmatpush1.bf16.msra.mxu0 0
        %1735 = vmatprep.subr.bf16.mxu0 0
        %1736 = vmatpush1.bf16.msra.mxu0 0
        %1737 = vmatprep.subr.bf16.mxu0 0
        %1738 = vmatpush1.bf16.msra.mxu0 0
        %1739 = vmatprep.subr.bf16.mxu0 0
        %1740 = vmatpush1.bf16.msra.mxu0 0
        %1741 = vmatprep.subr.bf16.mxu0 0
        %1742 = vmatpush1.bf16.msra.mxu0 0
        %1743 = vmatprep.subr.bf16.mxu0 0
        %1744 = vmatpush1.bf16.msra.mxu0 0
        %1745 = vmatprep.subr.bf16.mxu0 0
        %1746 = vmatpush1.bf16.msra.mxu0 0
        %1747 = vmatprep.subr.bf16.mxu0 0
        %1748 = vmatpush1.bf16.msra.mxu0 0
        %1749 = vmatprep.subr.bf16.mxu0 0
        %1750 = vmatpush1.bf16.msra.mxu0 0
        %1751 = vmatprep.subr.bf16.mxu0 0
        %1752 = vmatpush1.bf16.msra.mxu0 0
        %1753 = vmatprep.subr.bf16.mxu0 0
        %1754 = vmatpush1.bf16.msra.mxu0 0
        %1755 = vmatprep.subr.bf16.mxu0 0
        %1756 = vmatpush1.bf16.msra.mxu0 0
        %1757 = vmatprep.mubr.bf16.mxu0 0
        %1758 = vmatmul.mubr.bf16.gmra.mrb[0].mxu0 %v1651
        %v1759 = vpop.f32.mrb[0].mxu0
        %v1760 = vadd.f32 0.0, %v1759
        %v1761 = vpop.f32.mrb[0].mxu0
        %v1762 = vpop.f32.mrb[0].mxu0
        %v1763 = vpop.f32.mrb[0].mxu0
        %1764 = vdwg.mxu0
        %v1765 = vxor.u32 %v1688, 2147483648
        %v1766 = vmul.f32 %v1765, 1.442695
        %v1767 = vpow.pop %v1766
        %v1768 = vadd.f32 %v1767, 1.0
        %v1769 = vrcp.pop %v1768
        %v1770 = vmul.f32 1.0, %v1769
        %v1771 = vmul.f32 %v1688, %v1770
        %v1772 = vmul.f32 %v1771, %v1760
        %v1773 = vld [vmem:[%s663] sm:$0xff]
        %v1774 = vpack.c.bf16 %v1772, %v1772
        %v1775 = vld [vmem:[%s668] sm:$0xf]
        %v1776 = vld [vmem:[%s668 + $0x4] sm:$0xf]
        %v1777 = vld [vmem:[%s668 + $0x8] sm:$0xf]
        %v1778 = vld [vmem:[%s668 + $0xc] sm:$0xf]
        %v1779 = vld [vmem:[%s668 + $0x10] sm:$0xf]
        %v1780 = vld [vmem:[%s668 + $0x14] sm:$0xf]
        %v1781 = vld [vmem:[%s668 + $0x18] sm:$0xf]
        %v1782 = vld [vmem:[%s668 + $0x1c] sm:$0xf]
        %v1783 = vld [vmem:[%s668 + $0x20] sm:$0xf]
        %v1784 = vld [vmem:[%s668 + $0x24] sm:$0xf]
        %v1785 = vld [vmem:[%s668 + $0x28] sm:$0xf]
        %v1786 = vld [vmem:[%s668 + $0x2c] sm:$0xf]
        %v1787 = vld [vmem:[%s668 + $0x30] sm:$0xf]
        %v1788 = vld [vmem:[%s668 + $0x34] sm:$0xf]
        %v1789 = vld [vmem:[%s668 + $0x38] sm:$0xf]
        %v1790 = vld [vmem:[%s668 + $0x3c] sm:$0xf]
        %v1807 = vunpack.c.l.b16 %v1775
        %v1808 = vunpack.c.l.b16 %v1776
        %v1809 = vunpack.c.l.b16 %v1777
        %v1810 = vunpack.c.l.b16 %v1778
        %v1811 = vunpack.c.l.b16 %v1779
        %v1812 = vunpack.c.l.b16 %v1780
        %v1813 = vunpack.c.l.b16 %v1781
        %v1814 = vunpack.c.l.b16 %v1782
        %v1815 = vunpack.c.l.b16 %v1783
        %v1816 = vunpack.c.l.b16 %v1784
        %v1817 = vunpack.c.l.b16 %v1785
        %v1818 = vunpack.c.l.b16 %v1786
        %v1819 = vunpack.c.l.b16 %v1787
        %v1820 = vunpack.c.l.b16 %v1788
        %v1821 = vunpack.c.l.b16 %v1789
        %v1822 = vunpack.c.l.b16 %v1790
        %v1823 = vpack.c.b16 %v1808, %v1807
        %v1824 = vpack.c.b16 %v1810, %v1809
        %v1825 = vpack.c.b16 %v1812, %v1811
        %v1826 = vpack.c.b16 %v1814, %v1813
        %v1827 = vpack.c.b16 %v1816, %v1815
        %v1828 = vpack.c.b16 %v1818, %v1817
        %v1829 = vpack.c.b16 %v1820, %v1819
        %v1830 = vpack.c.b16 %v1822, %v1821
        %1839 = vmatprep.subr.bf16.mxu0 0
        %1840 = vmatpush1.bf16.msra.mxu0 %v1823
        %1841 = vmatprep.subr.bf16.mxu0 0
        %1842 = vmatpush1.bf16.msra.mxu0 %v1824
        %1843 = vmatprep.subr.bf16.mxu0 0
        %1844 = vmatpush1.bf16.msra.mxu0 %v1825
        %1845 = vmatprep.subr.bf16.mxu0 0
        %1846 = vmatpush1.bf16.msra.mxu0 %v1826
        %1847 = vmatprep.subr.bf16.mxu0 0
        %1848 = vmatpush1.bf16.msra.mxu0 %v1827
        %1849 = vmatprep.subr.bf16.mxu0 0
        %1850 = vmatpush1.bf16.msra.mxu0 %v1828
        %1851 = vmatprep.subr.bf16.mxu0 0
        %1852 = vmatpush1.bf16.msra.mxu0 %v1829
        %1853 = vmatprep.subr.bf16.mxu0 0
        %1854 = vmatpush1.bf16.msra.mxu0 %v1830
        %1855 = vmatprep.subr.bf16.mxu0 0
        %1856 = vmatpush1.bf16.msra.mxu0 0
        %1857 = vmatprep.subr.bf16.mxu0 0
        %1858 = vmatpush1.bf16.msra.mxu0 0
        %1859 = vmatprep.subr.bf16.mxu0 0
        %1860 = vmatpush1.bf16.msra.mxu0 0
        %1861 = vmatprep.subr.bf16.mxu0 0
        %1862 = vmatpush1.bf16.msra.mxu0 0
        %1863 = vmatprep.subr.bf16.mxu0 0
        %1864 = vmatpush1.bf16.msra.mxu0 0
        %1865 = vmatprep.subr.bf16.mxu0 0
        %1866 = vmatpush1.bf16.msra.mxu0 0
        %1867 = vmatprep.subr.bf16.mxu0 0
        %1868 = vmatpush1.bf16.msra.mxu0 0
        %1869 = vmatprep.subr.bf16.mxu0 0
        %1870 = vmatpush1.bf16.msra.mxu0 0
        %1871 = vmatprep.mubr.bf16.mxu0 0
        %1872 = vmatmul.mubr.bf16.gmra.mrb[0].mxu0 %v1774
        %v1873 = vpop.f32.mrb[0].mxu0
        %v1874 = vadd.f32 0.0, %v1873
        %v1875 = vpop.f32.mrb[0].mxu0
        %v1876 = vpop.f32.mrb[0].mxu0
        %v1877 = vpop.f32.mrb[0].mxu0
        %1878 = vdwg.mxu0
        %v1879 = vadd.f32 %v1773, %v1874
        %1880 = vst.msk [vmem:[%s663] sm:$0xff] %vm1649, %v1879
        %s1881 = sand.u32 %s322, 1
        %s1882 = scalar_lea.sflag [#allocation5], %s1881
        %s1883 = sand.u32 %s322, 1
        %s1884 = smul.addr %s1883, 8
        %s1885 = scalar_lea.vmem [#allocation11], %s1884
        // Predicated region
        $region167: #{tpu_custom_call.1} parent=141 // pred_check
          %p1886 = pneg %p332
        $region168: #{tpu_custom_call.1} parent=141 // pred_check_branch
          %1888 = sbr.rel (%p1886) target = $region170
        $region169: #{tpu_custom_call.1} parent=141 // pred_region
          %s1890 = ssub.s32 128, 128
          %1891 = vsyncadd %s1882, %s1890
          %s1892 = smul.addr %s34, 128
          %s1893 = scalar_lea.hbm %s12, %s1892
          %s1895 = sshll.u32 %s1885, 4
          %s1896 = int_to_ptr.vmem [resolvable:$true] %s1895
          %1898 = dma.vmem_to_hbm [thread:$0]  %s1896, 128, %s1893, %s1882
        $region170: #{tpu_custom_call.1} parent=141 // pred_fallthru
          _
      $region142: #{tpu_custom_call.1} parent=5 // pred_fallthru
        _
      %p1899 = scmp.le.s32.totalorder 2, %s25
      // Predicated region
      $region171: #{tpu_custom_call.1} parent=5 // pred_check
        %p1900 = pneg %p1899
      $region172: #{tpu_custom_call.1} parent=5 // pred_check_branch
        %1902 = sbr.rel (%p1900) target = $region174
      $region173: #{tpu_custom_call.1} parent=5 // pred_region
        %s1903 = ssub.s32 %s25, 2
        // Predicated region
        $region175: #{tpu_custom_call.1} parent=173 // pred_check
          %p1904 = pneg %p338
        $region176: #{tpu_custom_call.1} parent=173 // pred_check_branch
          %1906 = sbr.rel (%p1904) target = $region178
        $region177: #{tpu_custom_call.1} parent=173 // pred_region
          %s1907 = sand.u32 %s323, 1
          %s1908 = scalar_lea.sflag [#allocation5], %s1907
          %s1909 = sand.u32 %s323, 1
          %s1910 = smul.addr %s1909, 8
          %s1911 = scalar_lea.vmem [#allocation11], %s1910
          %1912 = dma.done %s1908, 128
        $region178: #{tpu_custom_call.1} parent=173 // pred_fallthru
          _
      $region174: #{tpu_custom_call.1} parent=5 // pred_fallthru
        _
    $region6: #{tpu_custom_call.1} parent=1 // loop_footer
      %s29 = sadd.s32 1, %s25
    $region7: #{tpu_custom_call.1} parent=1 // loop_footer_branch
      %24 = sbr.rel target = $region3
    $region8: #{tpu_custom_call.1} parent=1 // loop_exit
      _
    %1913 = vsyncpa [#allocation4], 1
    %s1914 = scalar_lea.sflag [#allocation4], 1
    %1915 = vsyncpa %s1914, 1
    %1916 = vsyncpa [#allocation7], 1
    %1917 = vsyncpa [#allocation5], 1
    %s1918 = scalar_lea.sflag [#allocation5], 1
    %1919 = vsyncpa %s1918, 1

</llo_original>
